<compile_context>
chip_gen: v7x
topology: tpu7x:2x2x1
jax: 0.10.0
libtpu: 0.0.40
codegen_flags: <defaults>
</compile_context>

<pallas_src>
import numpy as np
import jax
import jax.numpy as jnp
from jax.experimental import pallas as pl
from jax.experimental.pallas import tpu as pltpu

SUBLANE = 8
LANE = 128


def _round_up(x, m):
    return ((x + m - 1) // m) * m


# ---------------------------------------------------------------------------
# Fused Pallas kernel: input projection + RNN recurrence + temporal softmax loss
# ---------------------------------------------------------------------------
def _make_fused_kernel(T, Np, Hp, Vp, scale):
    def kernel(x_ref,      # (T*Np, Dp) f32   embedded inputs (time-major, batch-padded)
               h0_ref,     # (Np, Hp)   f32
               wx_ref,     # (Dp, Hp)   f32
               wh_ref,     # (Hp, Hp)   f32
               b_ref,      # (1, Hp)    f32
               wv_ref,     # (Hp, Vp)   f32
               bv_ref,     # (1, Vp)    f32   (padded lanes pre-set to -1e30)
               tgt_ref,    # (T, Np, 1) int32  target word ids
               mask_ref,   # (T, Np, 1) f32    loss mask (0 for NULL / padded rows)
               loss_ref,   # (8, 128)   f32    lane-dense scalar output
               a_scr):     # VMEM (T*Np, Hp) f32 scratch: hoisted input projection
        # --- hoisted projection: one well-shaped MXU matmul for all timesteps ---
        a_scr[...] = (jnp.dot(x_ref[...], wx_ref[...],
                              preferred_element_type=jnp.float32) + b_ref[...])

        # loop-invariant loads / broadcasts hoisted out of the time loop
        wh = wh_ref[...]
        wv = wv_ref[...]
        bv = bv_ref[...]                                   # padded lanes already -1e30
        lane = jax.lax.broadcasted_iota(jnp.int32, (Np, Vp), 1)

        def step(t, carry):
            h_prev, loss = carry
            row = pl.multiple_of(t * Np, Np)
            a_t = a_scr[pl.ds(row, Np), :]                           # (Np, Hp)
            h = jnp.tanh(a_t + jnp.dot(h_prev, wh,
                                       preferred_element_type=jnp.float32))
            logits = jnp.dot(h, wv, preferred_element_type=jnp.float32) + bv
            mx = jnp.max(logits, axis=-1, keepdims=True)             # (Np, 1)
            lse = jnp.log(jnp.sum(jnp.exp(logits - mx), axis=-1,
                                  keepdims=True)) + mx               # (Np, 1)
            y_t = tgt_ref[t]                                         # (Np, 1) int32
            correct = jnp.sum(jnp.where(lane == y_t, logits, 0.0),
                              axis=-1, keepdims=True)                # (Np, 1)
            loss = loss + jnp.sum(mask_ref[t] * (lse - correct))
            return h, loss

        _, total = jax.lax.fori_loop(0, T, step,
                                     (h0_ref[...], jnp.float32(0.0)),
                                     unroll=True)
        # single unmasked, lane-dense store of the (already 1/N-normalized) loss
        loss_ref[...] = jnp.full(loss_ref.shape, total * scale, dtype=jnp.float32)

    return kernel


def fused_rnn_temporal_loss(x2d, h0, Wx, Wh, b_row, Wv, bv_row, tgt, mask_f, scale):
    TNp, Dp = x2d.shape
    T, Np, _ = tgt.shape
    Hp = Wh.shape[0]
    Vp = Wv.shape[1]

    kernel = _make_fused_kernel(T, Np, Hp, Vp, float(scale))
    loss_block = pl.pallas_call(
        kernel,
        out_shape=jax.ShapeDtypeStruct((SUBLANE, LANE), jnp.float32),
        grid=(1,),
        in_specs=[
            pl.BlockSpec((TNp, Dp), lambda i: (0, 0)),      # x (all timesteps)
            pl.BlockSpec((Np, Hp), lambda i: (0, 0)),       # h0
            pl.BlockSpec((Dp, Hp), lambda i: (0, 0)),       # Wx
            pl.BlockSpec((Hp, Hp), lambda i: (0, 0)),       # Wh
            pl.BlockSpec((1, Hp), lambda i: (0, 0)),        # b
            pl.BlockSpec((Hp, Vp), lambda i: (0, 0)),       # W_vocab
            pl.BlockSpec((1, Vp), lambda i: (0, 0)),        # b_vocab (padded lanes -1e30)
            pl.BlockSpec((T, Np, 1), lambda i: (0, 0, 0)),  # targets (int32)
            pl.BlockSpec((T, Np, 1), lambda i: (0, 0, 0)),  # mask
        ],
        out_specs=pl.BlockSpec((SUBLANE, LANE), lambda i: (0, 0)),
        scratch_shapes=[pltpu.VMEM((TNp, Hp), jnp.float32)],
        compiler_params=pltpu.CompilerParams(
            dimension_semantics=("arbitrary",),
            vmem_limit_bytes=16 * 1024 * 1024,
        ),
    )(x2d, h0, Wx, Wh, b_row, Wv, bv_row, tgt, mask_f)
    return loss_block


# ---------------------------------------------------------------------------
# Module-equivalent wrapper
# ---------------------------------------------------------------------------
class RNNPallas:
    def __init__(self, word_to_idx, wordvec_dim, hidden_dim, cell_type, seed):
        vocab_size = len(word_to_idx)
        self.start_token = word_to_idx['<START>']
        self.null_token = word_to_idx['<NULL>']
        self.end_token = word_to_idx['<END>']
        self.cell_type = cell_type
        self.vocab_size = vocab_size
        if seed is not None:
            np.random.seed(seed)
        p = {}
        p['W_embed'] = np.random.randn(vocab_size, wordvec_dim) / 100.0
        dim_mul = {'lstm': 4, 'rnn': 1}[cell_type]
        p['Wx'] = np.random.randn(wordvec_dim, dim_mul * hidden_dim) / np.sqrt(wordvec_dim)
        p['Wh'] = np.random.randn(hidden_dim, dim_mul * hidden_dim) / np.sqrt(hidden_dim)
        p['b'] = np.zeros(dim_mul * hidden_dim)
        p['W_vocab'] = np.random.randn(hidden_dim, vocab_size) / np.sqrt(hidden_dim)
        p['b_vocab'] = np.zeros(vocab_size)
        p['h_init'] = np.random.randn(hidden_dim)
        # unpadded params (reference / module parity)
        self.params = {k: jnp.asarray(v, dtype=jnp.float32) for k, v in p.items()}

        # hardware-friendly zero-padded copies, built once at init
        D, H, V = wordvec_dim, hidden_dim, vocab_size
        Dp, Hp, Vp = _round_up(D, LANE), _round_up(H, LANE), _round_up(V, LANE)
        self._Dp, self._Hp, self._Vp = Dp, Hp, Vp
        pp = {}
        pp['W_embed'] = jnp.pad(self.params['W_embed'], ((0, 0), (0, Dp - D)))
        pp['Wx'] = jnp.pad(self.params['Wx'], ((0, Dp - D), (0, Hp - H)))
        pp['Wh'] = jnp.pad(self.params['Wh'], ((0, Hp - H), (0, Hp - H)))
        pp['b'] = jnp.pad(self.params['b'], (0, Hp - H))[None, :]
        pp['W_vocab'] = jnp.pad(self.params['W_vocab'], ((0, Hp - H), (0, Vp - V)))
        # padded vocab lanes are dead: bake the -1e30 logit mask into the padded bias
        pp['b_vocab'] = jnp.pad(self.params['b_vocab'], (0, Vp - V),
                                constant_values=-1e30)[None, :]
        pp['h_init'] = jnp.pad(self.params['h_init'], (0, Hp - H))
        self._padded = pp

    def forward(self, captions):
        # captions: (N, T+1) int32
        if self.cell_type != 'rnn':
            # TODO(synk): lstm cell_type not implemented in this Pallas port (rnn only).
            return None
        captions = jnp.asarray(captions, dtype=jnp.int32)
        captions_out = captions[:, 1:]                   # (N, T)
        captions_in = captions[:, :-1]                   # (N, T)
        N, T = captions_in.shape
        Np = max(SUBLANE, _round_up(N, SUBLANE))
        Dp, Hp, Vp = self._Dp, self._Hp, self._Vp
        pp = self._padded

        # time-major embedding gather: transpose the tiny index array, never the tensor
        # TODO(synk): embedding row-gather stays in XLA (data-dependent gather); at real
        # vocab sizes move it into the kernel via scalar-prefetched indices + pl.Element.
        x = jnp.take(pp['W_embed'], captions_in.T, axis=0)       # (T, N, Dp)
        x = jnp.pad(x, ((0, 0), (0, Np - N), (0, 0)))            # (T, Np, Dp)
        x2d = x.reshape(T * Np, Dp)

        h0 = jnp.broadcast_to(pp['h_init'][None, :], (Np, Hp))   # (Np, Hp)

        tgt = jnp.pad(captions_out.T, ((0, 0), (0, Np - N)))[..., None]      # (T,Np,1) i32
        mask = (captions_out != self.null_token).T.astype(jnp.float32)
        mask = jnp.pad(mask, ((0, 0), (0, Np - N)))[..., None]               # (T,Np,1) f32

        loss_block = fused_rnn_temporal_loss(
            x2d, h0, pp['Wx'], pp['Wh'], pp['b'],
            pp['W_vocab'], pp['b_vocab'], tgt, mask, 1.0 / N)
        return loss_block[0, 0]


# ---------------------------------------------------------------------------
# Pure-numpy reference (matches the PyTorch module's forward semantics)
# ---------------------------------------------------------------------------
def reference_loss(params, captions, null_token):
    p = {k: np.asarray(v) for k, v in params.items()}
    captions = np.asarray(captions)
    captions_in, captions_out = captions[:, :-1], captions[:, 1:]
    mask = (captions_out != null_token)
    x = p['W_embed'][captions_in]                    # (N, T, D)
    N, T, _ = x.shape
    h = np.tile(p['h_init'], (N, 1))
    hs = []
    for t in range(T):
        h = np.tanh(x[:, t] @ p['Wx'] + h @ p['Wh'] + p['b'])
        hs.append(h)
    hs = np.stack(hs, axis=1)                        # (N, T, H)
    out = hs @ p['W_vocab'] + p['b_vocab']           # (N, T, V)
    flat = out.reshape(N * T, -1).astype(np.float64)
    y = captions_out.reshape(-1)
    m = mask.reshape(-1).astype(np.float64)
    shifted = flat - flat.max(axis=1, keepdims=True)
    logp = shifted - np.log(np.exp(shifted).sum(axis=1, keepdims=True))
    return -(m * logp[np.arange(N * T), y]).sum() / N


# ---------------------------------------------------------------------------
if __name__ == "__main__":
    # synthetic vocabulary (replaces make_dict('goblet_of_fire.txt'))
    vocab = ['<NULL>', '<START>', '<END>'] + [f'w{i}' for i in range(61)]
    word_to_idx = {w: i for i, w in enumerate(vocab)}

    N, T_plus_1 = 2, 9
    wordvec_dim, hidden_dim = 32, 32

    model = RNNPallas(word_to_idx, wordvec_dim, hidden_dim, cell_type='rnn', seed=0)

    key = jax.random.PRNGKey(0)
    captions = jax.random.randint(key, (N, T_plus_1), 0, len(vocab), dtype=jnp.int32)
    # make the first token a <START> token like a real caption batch
    captions = captions.at[:, 0].set(word_to_idx['<START>'])

    loss = model.forward(captions)
    loss = jax.block_until_ready(loss)

    ref = reference_loss(model.params, captions, model.null_token)
    assert np.isfinite(float(loss))
    assert abs(float(loss) - float(ref)) <= 1e-3 * max(1.0, abs(float(ref))), (
        f"pallas={float(loss)} ref={float(ref)}")

    print("KERNEL_OK")
</pallas_src>

<mosaic_0001>
module attributes {stable_mosaic.version = 11 : i64} {
  func.func @kernel(%arg0: i32, %arg1: memref<64x128xf32, #tpu.memory_space<vmem>>, %arg2: memref<8x128xf32, #tpu.memory_space<vmem>>, %arg3: memref<128x128xf32, #tpu.memory_space<vmem>>, %arg4: memref<128x128xf32, #tpu.memory_space<vmem>>, %arg5: memref<1x128xf32, #tpu.memory_space<vmem>>, %arg6: memref<128x128xf32, #tpu.memory_space<vmem>>, %arg7: memref<1x128xf32, #tpu.memory_space<vmem>>, %arg8: memref<8x8x1xi32, #tpu.memory_space<vmem>>, %arg9: memref<8x8x1xf32, #tpu.memory_space<vmem>>, %arg10: memref<8x128xf32, #tpu.memory_space<vmem>>, %arg11: memref<64x128xf32, #tpu.memory_space<vmem>>) attributes {dimension_semantics = [#tpu.dimension_semantics<arbitrary>], iteration_bounds = array<i64: 1>, scalar_prefetch = 0 : i64, scratch_operands = 1 : i64, tpu.core_type = #tpu.core_type<tc>, window_params = [{pipeline_mode = #tpu.pipeline_mode<synchronous>, transform_indices = @transform_0, window_bounds = array<i64: 64, 128>}, {pipeline_mode = #tpu.pipeline_mode<synchronous>, transform_indices = @transform_1, window_bounds = array<i64: 8, 128>}, {pipeline_mode = #tpu.pipeline_mode<synchronous>, transform_indices = @transform_2, window_bounds = array<i64: 128, 128>}, {pipeline_mode = #tpu.pipeline_mode<synchronous>, transform_indices = @transform_3, window_bounds = array<i64: 128, 128>}, {pipeline_mode = #tpu.pipeline_mode<synchronous>, transform_indices = @transform_4, window_bounds = array<i64: 1, 128>}, {pipeline_mode = #tpu.pipeline_mode<synchronous>, transform_indices = @transform_5, window_bounds = array<i64: 128, 128>}, {pipeline_mode = #tpu.pipeline_mode<synchronous>, transform_indices = @transform_6, window_bounds = array<i64: 1, 128>}, {pipeline_mode = #tpu.pipeline_mode<synchronous>, transform_indices = @transform_7, window_bounds = array<i64: 8, 8, 1>}, {pipeline_mode = #tpu.pipeline_mode<synchronous>, transform_indices = @transform_8, window_bounds = array<i64: 8, 8, 1>}, {pipeline_mode = #tpu.pipeline_mode<synchronous>, transform_indices = @transform_9, window_bounds = array<i64: 8, 128>}]} {
    %c0 = arith.constant 0 : index
    %c0_0 = arith.constant 0 : index
    %0 = vector.load %arg1[%c0, %c0_0] : memref<64x128xf32, #tpu.memory_space<vmem>>, vector<64x128xf32>
    %c0_1 = arith.constant 0 : index
    %c0_2 = arith.constant 0 : index
    %1 = vector.load %arg3[%c0_1, %c0_2] : memref<128x128xf32, #tpu.memory_space<vmem>>, vector<128x128xf32>
    %cst = arith.constant dense<0.000000e+00> : vector<64x128xf32>
    %2 = tpu.matmul %0, %1, %cst {dimension_numbers = #tpu.dot_dimension_numbers<[1], [0], [0], [1], [0, 0, 1, 1], [], []>} : vector<64x128xf32>, vector<128x128xf32>, vector<64x128xf32> -> vector<64x128xf32>
    %c0_3 = arith.constant 0 : index
    %c0_4 = arith.constant 0 : index
    %3 = vector.load %arg5[%c0_3, %c0_4] : memref<1x128xf32, #tpu.memory_space<vmem>>, vector<1x128xf32>
    %4 = vector.broadcast %3 : vector<1x128xf32> to vector<64x128xf32>
    %5 = arith.addf %2, %4 : vector<64x128xf32>
    %c0_5 = arith.constant 0 : index
    %c0_6 = arith.constant 0 : index
    %6 = vector.load %arg11[%c0_5, %c0_6] : memref<64x128xf32, #tpu.memory_space<vmem>>, vector<64x128xf32>
    tpu.vector_store %arg11[%c0_5, %c0_6], %5 {strides = array<i32>} : memref<64x128xf32, #tpu.memory_space<vmem>>, vector<64x128xf32>,
    %c0_7 = arith.constant 0 : index
    %c0_8 = arith.constant 0 : index
    %7 = vector.load %arg4[%c0_7, %c0_8] : memref<128x128xf32, #tpu.memory_space<vmem>>, vector<128x128xf32>
    %c0_9 = arith.constant 0 : index
    %c0_10 = arith.constant 0 : index
    %8 = vector.load %arg6[%c0_9, %c0_10] : memref<128x128xf32, #tpu.memory_space<vmem>>, vector<128x128xf32>
    %c0_11 = arith.constant 0 : index
    %c0_12 = arith.constant 0 : index
    %9 = vector.load %arg7[%c0_11, %c0_12] : memref<1x128xf32, #tpu.memory_space<vmem>>, vector<1x128xf32>
    %10 = tpu.iota {dimensions = array<i32: 1>} : vector<8x128xi32>
    %c0_13 = arith.constant 0 : index
    %c0_14 = arith.constant 0 : index
    %11 = vector.load %arg2[%c0_13, %c0_14] : memref<8x128xf32, #tpu.memory_space<vmem>>, vector<8x128xf32>
    %cst_15 = arith.constant 0.000000e+00 : f32
    %c0_i32 = arith.constant 0 : i32
    %c8_i32 = arith.constant 8 : i32
    %12 = arith.muli %c0_i32, %c8_i32 : i32
    %13 = tpu.assume_multiple %12, 8 : i32
    %14 = arith.index_cast %13 : i32 to index
    %c0_16 = arith.constant 0 : index
    %15 = vector.load %arg11[%14, %c0_16] : memref<64x128xf32, #tpu.memory_space<vmem>>, vector<8x128xf32>
    %cst_17 = arith.constant dense<0.000000e+00> : vector<8x128xf32>
    %16 = tpu.matmul %11, %7, %cst_17 {dimension_numbers = #tpu.dot_dimension_numbers<[1], [0], [0], [1], [0, 0, 1, 1], [], []>} : vector<8x128xf32>, vector<128x128xf32>, vector<8x128xf32> -> vector<8x128xf32>
    %17 = arith.addf %15, %16 : vector<8x128xf32>
    %18 = math.tanh %17 : vector<8x128xf32>
    %cst_18 = arith.constant dense<0.000000e+00> : vector<8x128xf32>
    %19 = tpu.matmul %18, %8, %cst_18 {dimension_numbers = #tpu.dot_dimension_numbers<[1], [0], [0], [1], [0, 0, 1, 1], [], []>} : vector<8x128xf32>, vector<128x128xf32>, vector<8x128xf32> -> vector<8x128xf32>
    %20 = vector.broadcast %9 : vector<1x128xf32> to vector<8x128xf32>
    %21 = arith.addf %19, %20 : vector<8x128xf32>
    %cst_19 = arith.constant dense<0xFF800000> : vector<8xf32>
    %22 = vector.multi_reduction <maximumf>, %21, %cst_19 [1] : vector<8x128xf32> to vector<8xf32>
    %23 = vector.shape_cast %22 : vector<8xf32> to vector<8x1xf32>
    %24 = vector.broadcast %23 : vector<8x1xf32> to vector<8x128xf32>
    %25 = arith.subf %21, %24 : vector<8x128xf32>
    %26 = math.exp %25 : vector<8x128xf32>
    %cst_20 = arith.constant dense<0.000000e+00> : vector<8xf32>
    %27 = vector.multi_reduction <add>, %26, %cst_20 [1] : vector<8x128xf32> to vector<8xf32>
    %28 = vector.shape_cast %27 : vector<8xf32> to vector<8x1xf32>
    %29 = math.log %28 : vector<8x1xf32>
    %30 = arith.addf %29, %23 : vector<8x1xf32>
    %31 = arith.index_cast %c0_i32 : i32 to index
    %c0_21 = arith.constant 0 : index
    %c0_22 = arith.constant 0 : index
    %32 = vector.load %arg8[%31, %c0_21, %c0_22] : memref<8x8x1xi32, #tpu.memory_space<vmem>>, vector<1x8x1xi32>
    %33 = vector.shape_cast %32 : vector<1x8x1xi32> to vector<8x1xi32>
    %34 = vector.broadcast %33 : vector<8x1xi32> to vector<8x128xi32>
    %35 = arith.cmpi eq, %10, %34 : vector<8x128xi32>
    %cst_23 = arith.constant 0.000000e+00 : f32
    %36 = vector.broadcast %cst_23 : f32 to vector<8x128xf32>
    %37 = arith.select %35, %21, %36 : vector<8x128xi1>, vector<8x128xf32>
    %cst_24 = arith.constant dense<0.000000e+00> : vector<8xf32>
    %38 = vector.multi_reduction <add>, %37, %cst_24 [1] : vector<8x128xf32> to vector<8xf32>
    %39 = vector.shape_cast %38 : vector<8xf32> to vector<8x1xf32>
    %40 = arith.index_cast %c0_i32 : i32 to index
    %c0_25 = arith.constant 0 : index
    %c0_26 = arith.constant 0 : index
    %41 = vector.load %arg9[%40, %c0_25, %c0_26] : memref<8x8x1xf32, #tpu.memory_space<vmem>>, vector<1x8x1xf32>
    %42 = vector.shape_cast %41 : vector<1x8x1xf32> to vector<8x1xf32>
    %43 = arith.subf %30, %39 : vector<8x1xf32>
    %44 = arith.mulf %42, %43 : vector<8x1xf32>
    %45 = vector.shape_cast %44 : vector<8x1xf32> to vector<1x8x1xf32>
    %cst_27 = arith.constant dense<0.000000e+00> : vector<1xf32>
    %46 = vector.multi_reduction <add>, %45, %cst_27 [1, 2] : vector<1x8x1xf32> to vector<1xf32>
    %47 = vector.shape_cast %46 : vector<1xf32> to vector<1x1x1xf32>
    %48 = vector.extract %47[0, 0, 0] : f32 from vector<1x1x1xf32>
    %49 = arith.addf %cst_15, %48 : f32
    %c1_i32 = arith.constant 1 : i32
    %c8_i32_28 = arith.constant 8 : i32
    %50 = arith.muli %c1_i32, %c8_i32_28 : i32
    %51 = tpu.assume_multiple %50, 8 : i32
    %52 = arith.index_cast %51 : i32 to index
    %c0_29 = arith.constant 0 : index
    %53 = vector.load %arg11[%52, %c0_29] : memref<64x128xf32, #tpu.memory_space<vmem>>, vector<8x128xf32>
    %cst_30 = arith.constant dense<0.000000e+00> : vector<8x128xf32>
    %54 = tpu.matmul %18, %7, %cst_30 {dimension_numbers = #tpu.dot_dimension_numbers<[1], [0], [0], [1], [0, 0, 1, 1], [], []>} : vector<8x128xf32>, vector<128x128xf32>, vector<8x128xf32> -> vector<8x128xf32>
    %55 = arith.addf %53, %54 : vector<8x128xf32>
    %56 = math.tanh %55 : vector<8x128xf32>
    %cst_31 = arith.constant dense<0.000000e+00> : vector<8x128xf32>
    %57 = tpu.matmul %56, %8, %cst_31 {dimension_numbers = #tpu.dot_dimension_numbers<[1], [0], [0], [1], [0, 0, 1, 1], [], []>} : vector<8x128xf32>, vector<128x128xf32>, vector<8x128xf32> -> vector<8x128xf32>
    %58 = vector.broadcast %9 : vector<1x128xf32> to vector<8x128xf32>
    %59 = arith.addf %57, %58 : vector<8x128xf32>
    %cst_32 = arith.constant dense<0xFF800000> : vector<8xf32>
    %60 = vector.multi_reduction <maximumf>, %59, %cst_32 [1] : vector<8x128xf32> to vector<8xf32>
    %61 = vector.shape_cast %60 : vector<8xf32> to vector<8x1xf32>
    %62 = vector.broadcast %61 : vector<8x1xf32> to vector<8x128xf32>
    %63 = arith.subf %59, %62 : vector<8x128xf32>
    %64 = math.exp %63 : vector<8x128xf32>
    %cst_33 = arith.constant dense<0.000000e+00> : vector<8xf32>
    %65 = vector.multi_reduction <add>, %64, %cst_33 [1] : vector<8x128xf32> to vector<8xf32>
    %66 = vector.shape_cast %65 : vector<8xf32> to vector<8x1xf32>
    %67 = math.log %66 : vector<8x1xf32>
    %68 = arith.addf %67, %61 : vector<8x1xf32>
    %69 = arith.index_cast %c1_i32 : i32 to index
    %c0_34 = arith.constant 0 : index
    %c0_35 = arith.constant 0 : index
    %70 = vector.load %arg8[%69, %c0_34, %c0_35] : memref<8x8x1xi32, #tpu.memory_space<vmem>>, vector<1x8x1xi32>
    %71 = vector.shape_cast %70 : vector<1x8x1xi32> to vector<8x1xi32>
    %72 = vector.broadcast %71 : vector<8x1xi32> to vector<8x128xi32>
    %73 = arith.cmpi eq, %10, %72 : vector<8x128xi32>
    %cst_36 = arith.constant 0.000000e+00 : f32
    %74 = vector.broadcast %cst_36 : f32 to vector<8x128xf32>
    %75 = arith.select %73, %59, %74 : vector<8x128xi1>, vector<8x128xf32>
    %cst_37 = arith.constant dense<0.000000e+00> : vector<8xf32>
    %76 = vector.multi_reduction <add>, %75, %cst_37 [1] : vector<8x128xf32> to vector<8xf32>
    %77 = vector.shape_cast %76 : vector<8xf32> to vector<8x1xf32>
    %78 = arith.index_cast %c1_i32 : i32 to index
    %c0_38 = arith.constant 0 : index
    %c0_39 = arith.constant 0 : index
    %79 = vector.load %arg9[%78, %c0_38, %c0_39] : memref<8x8x1xf32, #tpu.memory_space<vmem>>, vector<1x8x1xf32>
    %80 = vector.shape_cast %79 : vector<1x8x1xf32> to vector<8x1xf32>
    %81 = arith.subf %68, %77 : vector<8x1xf32>
    %82 = arith.mulf %80, %81 : vector<8x1xf32>
    %83 = vector.shape_cast %82 : vector<8x1xf32> to vector<1x8x1xf32>
    %cst_40 = arith.constant dense<0.000000e+00> : vector<1xf32>
    %84 = vector.multi_reduction <add>, %83, %cst_40 [1, 2] : vector<1x8x1xf32> to vector<1xf32>
    %85 = vector.shape_cast %84 : vector<1xf32> to vector<1x1x1xf32>
    %86 = vector.extract %85[0, 0, 0] : f32 from vector<1x1x1xf32>
    %87 = arith.addf %49, %86 : f32
    %c2_i32 = arith.constant 2 : i32
    %c8_i32_41 = arith.constant 8 : i32
    %88 = arith.muli %c2_i32, %c8_i32_41 : i32
    %89 = tpu.assume_multiple %88, 8 : i32
    %90 = arith.index_cast %89 : i32 to index
    %c0_42 = arith.constant 0 : index
    %91 = vector.load %arg11[%90, %c0_42] : memref<64x128xf32, #tpu.memory_space<vmem>>, vector<8x128xf32>
    %cst_43 = arith.constant dense<0.000000e+00> : vector<8x128xf32>
    %92 = tpu.matmul %56, %7, %cst_43 {dimension_numbers = #tpu.dot_dimension_numbers<[1], [0], [0], [1], [0, 0, 1, 1], [], []>} : vector<8x128xf32>, vector<128x128xf32>, vector<8x128xf32> -> vector<8x128xf32>
    %93 = arith.addf %91, %92 : vector<8x128xf32>
    %94 = math.tanh %93 : vector<8x128xf32>
    %cst_44 = arith.constant dense<0.000000e+00> : vector<8x128xf32>
    %95 = tpu.matmul %94, %8, %cst_44 {dimension_numbers = #tpu.dot_dimension_numbers<[1], [0], [0], [1], [0, 0, 1, 1], [], []>} : vector<8x128xf32>, vector<128x128xf32>, vector<8x128xf32> -> vector<8x128xf32>
    %96 = vector.broadcast %9 : vector<1x128xf32> to vector<8x128xf32>
    %97 = arith.addf %95, %96 : vector<8x128xf32>
    %cst_45 = arith.constant dense<0xFF800000> : vector<8xf32>
    %98 = vector.multi_reduction <maximumf>, %97, %cst_45 [1] : vector<8x128xf32> to vector<8xf32>
    %99 = vector.shape_cast %98 : vector<8xf32> to vector<8x1xf32>
    %100 = vector.broadcast %99 : vector<8x1xf32> to vector<8x128xf32>
    %101 = arith.subf %97, %100 : vector<8x128xf32>
    %102 = math.exp %101 : vector<8x128xf32>
    %cst_46 = arith.constant dense<0.000000e+00> : vector<8xf32>
    %103 = vector.multi_reduction <add>, %102, %cst_46 [1] : vector<8x128xf32> to vector<8xf32>
    %104 = vector.shape_cast %103 : vector<8xf32> to vector<8x1xf32>
    %105 = math.log %104 : vector<8x1xf32>
    %106 = arith.addf %105, %99 : vector<8x1xf32>
    %107 = arith.index_cast %c2_i32 : i32 to index
    %c0_47 = arith.constant 0 : index
    %c0_48 = arith.constant 0 : index
    %108 = vector.load %arg8[%107, %c0_47, %c0_48] : memref<8x8x1xi32, #tpu.memory_space<vmem>>, vector<1x8x1xi32>
    %109 = vector.shape_cast %108 : vector<1x8x1xi32> to vector<8x1xi32>
    %110 = vector.broadcast %109 : vector<8x1xi32> to vector<8x128xi32>
    %111 = arith.cmpi eq, %10, %110 : vector<8x128xi32>
    %cst_49 = arith.constant 0.000000e+00 : f32
    %112 = vector.broadcast %cst_49 : f32 to vector<8x128xf32>
    %113 = arith.select %111, %97, %112 : vector<8x128xi1>, vector<8x128xf32>
    %cst_50 = arith.constant dense<0.000000e+00> : vector<8xf32>
    %114 = vector.multi_reduction <add>, %113, %cst_50 [1] : vector<8x128xf32> to vector<8xf32>
    %115 = vector.shape_cast %114 : vector<8xf32> to vector<8x1xf32>
    %116 = arith.index_cast %c2_i32 : i32 to index
    %c0_51 = arith.constant 0 : index
    %c0_52 = arith.constant 0 : index
    %117 = vector.load %arg9[%116, %c0_51, %c0_52] : memref<8x8x1xf32, #tpu.memory_space<vmem>>, vector<1x8x1xf32>
    %118 = vector.shape_cast %117 : vector<1x8x1xf32> to vector<8x1xf32>
    %119 = arith.subf %106, %115 : vector<8x1xf32>
    %120 = arith.mulf %118, %119 : vector<8x1xf32>
    %121 = vector.shape_cast %120 : vector<8x1xf32> to vector<1x8x1xf32>
    %cst_53 = arith.constant dense<0.000000e+00> : vector<1xf32>
    %122 = vector.multi_reduction <add>, %121, %cst_53 [1, 2] : vector<1x8x1xf32> to vector<1xf32>
    %123 = vector.shape_cast %122 : vector<1xf32> to vector<1x1x1xf32>
    %124 = vector.extract %123[0, 0, 0] : f32 from vector<1x1x1xf32>
    %125 = arith.addf %87, %124 : f32
    %c3_i32 = arith.constant 3 : i32
    %c8_i32_54 = arith.constant 8 : i32
    %126 = arith.muli %c3_i32, %c8_i32_54 : i32
    %127 = tpu.assume_multiple %126, 8 : i32
    %128 = arith.index_cast %127 : i32 to index
    %c0_55 = arith.constant 0 : index
    %129 = vector.load %arg11[%128, %c0_55] : memref<64x128xf32, #tpu.memory_space<vmem>>, vector<8x128xf32>
    %cst_56 = arith.constant dense<0.000000e+00> : vector<8x128xf32>
    %130 = tpu.matmul %94, %7, %cst_56 {dimension_numbers = #tpu.dot_dimension_numbers<[1], [0], [0], [1], [0, 0, 1, 1], [], []>} : vector<8x128xf32>, vector<128x128xf32>, vector<8x128xf32> -> vector<8x128xf32>
    %131 = arith.addf %129, %130 : vector<8x128xf32>
    %132 = math.tanh %131 : vector<8x128xf32>
    %cst_57 = arith.constant dense<0.000000e+00> : vector<8x128xf32>
    %133 = tpu.matmul %132, %8, %cst_57 {dimension_numbers = #tpu.dot_dimension_numbers<[1], [0], [0], [1], [0, 0, 1, 1], [], []>} : vector<8x128xf32>, vector<128x128xf32>, vector<8x128xf32> -> vector<8x128xf32>
    %134 = vector.broadcast %9 : vector<1x128xf32> to vector<8x128xf32>
    %135 = arith.addf %133, %134 : vector<8x128xf32>
    %cst_58 = arith.constant dense<0xFF800000> : vector<8xf32>
    %136 = vector.multi_reduction <maximumf>, %135, %cst_58 [1] : vector<8x128xf32> to vector<8xf32>
    %137 = vector.shape_cast %136 : vector<8xf32> to vector<8x1xf32>
    %138 = vector.broadcast %137 : vector<8x1xf32> to vector<8x128xf32>
    %139 = arith.subf %135, %138 : vector<8x128xf32>
    %140 = math.exp %139 : vector<8x128xf32>
    %cst_59 = arith.constant dense<0.000000e+00> : vector<8xf32>
    %141 = vector.multi_reduction <add>, %140, %cst_59 [1] : vector<8x128xf32> to vector<8xf32>
    %142 = vector.shape_cast %141 : vector<8xf32> to vector<8x1xf32>
    %143 = math.log %142 : vector<8x1xf32>
    %144 = arith.addf %143, %137 : vector<8x1xf32>
    %145 = arith.index_cast %c3_i32 : i32 to index
    %c0_60 = arith.constant 0 : index
    %c0_61 = arith.constant 0 : index
    %146 = vector.load %arg8[%145, %c0_60, %c0_61] : memref<8x8x1xi32, #tpu.memory_space<vmem>>, vector<1x8x1xi32>
    %147 = vector.shape_cast %146 : vector<1x8x1xi32> to vector<8x1xi32>
    %148 = vector.broadcast %147 : vector<8x1xi32> to vector<8x128xi32>
    %149 = arith.cmpi eq, %10, %148 : vector<8x128xi32>
    %cst_62 = arith.constant 0.000000e+00 : f32
    %150 = vector.broadcast %cst_62 : f32 to vector<8x128xf32>
    %151 = arith.select %149, %135, %150 : vector<8x128xi1>, vector<8x128xf32>
    %cst_63 = arith.constant dense<0.000000e+00> : vector<8xf32>
    %152 = vector.multi_reduction <add>, %151, %cst_63 [1] : vector<8x128xf32> to vector<8xf32>
    %153 = vector.shape_cast %152 : vector<8xf32> to vector<8x1xf32>
    %154 = arith.index_cast %c3_i32 : i32 to index
    %c0_64 = arith.constant 0 : index
    %c0_65 = arith.constant 0 : index
    %155 = vector.load %arg9[%154, %c0_64, %c0_65] : memref<8x8x1xf32, #tpu.memory_space<vmem>>, vector<1x8x1xf32>
    %156 = vector.shape_cast %155 : vector<1x8x1xf32> to vector<8x1xf32>
    %157 = arith.subf %144, %153 : vector<8x1xf32>
    %158 = arith.mulf %156, %157 : vector<8x1xf32>
    %159 = vector.shape_cast %158 : vector<8x1xf32> to vector<1x8x1xf32>
    %cst_66 = arith.constant dense<0.000000e+00> : vector<1xf32>
    %160 = vector.multi_reduction <add>, %159, %cst_66 [1, 2] : vector<1x8x1xf32> to vector<1xf32>
    %161 = vector.shape_cast %160 : vector<1xf32> to vector<1x1x1xf32>
    %162 = vector.extract %161[0, 0, 0] : f32 from vector<1x1x1xf32>
    %163 = arith.addf %125, %162 : f32
    %c4_i32 = arith.constant 4 : i32
    %c8_i32_67 = arith.constant 8 : i32
    %164 = arith.muli %c4_i32, %c8_i32_67 : i32
    %165 = tpu.assume_multiple %164, 8 : i32
    %166 = arith.index_cast %165 : i32 to index
    %c0_68 = arith.constant 0 : index
    %167 = vector.load %arg11[%166, %c0_68] : memref<64x128xf32, #tpu.memory_space<vmem>>, vector<8x128xf32>
    %cst_69 = arith.constant dense<0.000000e+00> : vector<8x128xf32>
    %168 = tpu.matmul %132, %7, %cst_69 {dimension_numbers = #tpu.dot_dimension_numbers<[1], [0], [0], [1], [0, 0, 1, 1], [], []>} : vector<8x128xf32>, vector<128x128xf32>, vector<8x128xf32> -> vector<8x128xf32>
    %169 = arith.addf %167, %168 : vector<8x128xf32>
    %170 = math.tanh %169 : vector<8x128xf32>
    %cst_70 = arith.constant dense<0.000000e+00> : vector<8x128xf32>
    %171 = tpu.matmul %170, %8, %cst_70 {dimension_numbers = #tpu.dot_dimension_numbers<[1], [0], [0], [1], [0, 0, 1, 1], [], []>} : vector<8x128xf32>, vector<128x128xf32>, vector<8x128xf32> -> vector<8x128xf32>
    %172 = vector.broadcast %9 : vector<1x128xf32> to vector<8x128xf32>
    %173 = arith.addf %171, %172 : vector<8x128xf32>
    %cst_71 = arith.constant dense<0xFF800000> : vector<8xf32>
    %174 = vector.multi_reduction <maximumf>, %173, %cst_71 [1] : vector<8x128xf32> to vector<8xf32>
    %175 = vector.shape_cast %174 : vector<8xf32> to vector<8x1xf32>
    %176 = vector.broadcast %175 : vector<8x1xf32> to vector<8x128xf32>
    %177 = arith.subf %173, %176 : vector<8x128xf32>
    %178 = math.exp %177 : vector<8x128xf32>
    %cst_72 = arith.constant dense<0.000000e+00> : vector<8xf32>
    %179 = vector.multi_reduction <add>, %178, %cst_72 [1] : vector<8x128xf32> to vector<8xf32>
    %180 = vector.shape_cast %179 : vector<8xf32> to vector<8x1xf32>
    %181 = math.log %180 : vector<8x1xf32>
    %182 = arith.addf %181, %175 : vector<8x1xf32>
    %183 = arith.index_cast %c4_i32 : i32 to index
    %c0_73 = arith.constant 0 : index
    %c0_74 = arith.constant 0 : index
    %184 = vector.load %arg8[%183, %c0_73, %c0_74] : memref<8x8x1xi32, #tpu.memory_space<vmem>>, vector<1x8x1xi32>
    %185 = vector.shape_cast %184 : vector<1x8x1xi32> to vector<8x1xi32>
    %186 = vector.broadcast %185 : vector<8x1xi32> to vector<8x128xi32>
    %187 = arith.cmpi eq, %10, %186 : vector<8x128xi32>
    %cst_75 = arith.constant 0.000000e+00 : f32
    %188 = vector.broadcast %cst_75 : f32 to vector<8x128xf32>
    %189 = arith.select %187, %173, %188 : vector<8x128xi1>, vector<8x128xf32>
    %cst_76 = arith.constant dense<0.000000e+00> : vector<8xf32>
    %190 = vector.multi_reduction <add>, %189, %cst_76 [1] : vector<8x128xf32> to vector<8xf32>
    %191 = vector.shape_cast %190 : vector<8xf32> to vector<8x1xf32>
    %192 = arith.index_cast %c4_i32 : i32 to index
    %c0_77 = arith.constant 0 : index
    %c0_78 = arith.constant 0 : index
    %193 = vector.load %arg9[%192, %c0_77, %c0_78] : memref<8x8x1xf32, #tpu.memory_space<vmem>>, vector<1x8x1xf32>
    %194 = vector.shape_cast %193 : vector<1x8x1xf32> to vector<8x1xf32>
    %195 = arith.subf %182, %191 : vector<8x1xf32>
    %196 = arith.mulf %194, %195 : vector<8x1xf32>
    %197 = vector.shape_cast %196 : vector<8x1xf32> to vector<1x8x1xf32>
    %cst_79 = arith.constant dense<0.000000e+00> : vector<1xf32>
    %198 = vector.multi_reduction <add>, %197, %cst_79 [1, 2] : vector<1x8x1xf32> to vector<1xf32>
    %199 = vector.shape_cast %198 : vector<1xf32> to vector<1x1x1xf32>
    %200 = vector.extract %199[0, 0, 0] : f32 from vector<1x1x1xf32>
    %201 = arith.addf %163, %200 : f32
    %c5_i32 = arith.constant 5 : i32
    %c8_i32_80 = arith.constant 8 : i32
    %202 = arith.muli %c5_i32, %c8_i32_80 : i32
    %203 = tpu.assume_multiple %202, 8 : i32
    %204 = arith.index_cast %203 : i32 to index
    %c0_81 = arith.constant 0 : index
    %205 = vector.load %arg11[%204, %c0_81] : memref<64x128xf32, #tpu.memory_space<vmem>>, vector<8x128xf32>
    %cst_82 = arith.constant dense<0.000000e+00> : vector<8x128xf32>
    %206 = tpu.matmul %170, %7, %cst_82 {dimension_numbers = #tpu.dot_dimension_numbers<[1], [0], [0], [1], [0, 0, 1, 1], [], []>} : vector<8x128xf32>, vector<128x128xf32>, vector<8x128xf32> -> vector<8x128xf32>
    %207 = arith.addf %205, %206 : vector<8x128xf32>
    %208 = math.tanh %207 : vector<8x128xf32>
    %cst_83 = arith.constant dense<0.000000e+00> : vector<8x128xf32>
    %209 = tpu.matmul %208, %8, %cst_83 {dimension_numbers = #tpu.dot_dimension_numbers<[1], [0], [0], [1], [0, 0, 1, 1], [], []>} : vector<8x128xf32>, vector<128x128xf32>, vector<8x128xf32> -> vector<8x128xf32>
    %210 = vector.broadcast %9 : vector<1x128xf32> to vector<8x128xf32>
    %211 = arith.addf %209, %210 : vector<8x128xf32>
    %cst_84 = arith.constant dense<0xFF800000> : vector<8xf32>
    %212 = vector.multi_reduction <maximumf>, %211, %cst_84 [1] : vector<8x128xf32> to vector<8xf32>
    %213 = vector.shape_cast %212 : vector<8xf32> to vector<8x1xf32>
    %214 = vector.broadcast %213 : vector<8x1xf32> to vector<8x128xf32>
    %215 = arith.subf %211, %214 : vector<8x128xf32>
    %216 = math.exp %215 : vector<8x128xf32>
    %cst_85 = arith.constant dense<0.000000e+00> : vector<8xf32>
    %217 = vector.multi_reduction <add>, %216, %cst_85 [1] : vector<8x128xf32> to vector<8xf32>
    %218 = vector.shape_cast %217 : vector<8xf32> to vector<8x1xf32>
    %219 = math.log %218 : vector<8x1xf32>
    %220 = arith.addf %219, %213 : vector<8x1xf32>
    %221 = arith.index_cast %c5_i32 : i32 to index
    %c0_86 = arith.constant 0 : index
    %c0_87 = arith.constant 0 : index
    %222 = vector.load %arg8[%221, %c0_86, %c0_87] : memref<8x8x1xi32, #tpu.memory_space<vmem>>, vector<1x8x1xi32>
    %223 = vector.shape_cast %222 : vector<1x8x1xi32> to vector<8x1xi32>
    %224 = vector.broadcast %223 : vector<8x1xi32> to vector<8x128xi32>
    %225 = arith.cmpi eq, %10, %224 : vector<8x128xi32>
    %cst_88 = arith.constant 0.000000e+00 : f32
    %226 = vector.broadcast %cst_88 : f32 to vector<8x128xf32>
    %227 = arith.select %225, %211, %226 : vector<8x128xi1>, vector<8x128xf32>
    %cst_89 = arith.constant dense<0.000000e+00> : vector<8xf32>
    %228 = vector.multi_reduction <add>, %227, %cst_89 [1] : vector<8x128xf32> to vector<8xf32>
    %229 = vector.shape_cast %228 : vector<8xf32> to vector<8x1xf32>
    %230 = arith.index_cast %c5_i32 : i32 to index
    %c0_90 = arith.constant 0 : index
    %c0_91 = arith.constant 0 : index
    %231 = vector.load %arg9[%230, %c0_90, %c0_91] : memref<8x8x1xf32, #tpu.memory_space<vmem>>, vector<1x8x1xf32>
    %232 = vector.shape_cast %231 : vector<1x8x1xf32> to vector<8x1xf32>
    %233 = arith.subf %220, %229 : vector<8x1xf32>
    %234 = arith.mulf %232, %233 : vector<8x1xf32>
    %235 = vector.shape_cast %234 : vector<8x1xf32> to vector<1x8x1xf32>
    %cst_92 = arith.constant dense<0.000000e+00> : vector<1xf32>
    %236 = vector.multi_reduction <add>, %235, %cst_92 [1, 2] : vector<1x8x1xf32> to vector<1xf32>
    %237 = vector.shape_cast %236 : vector<1xf32> to vector<1x1x1xf32>
    %238 = vector.extract %237[0, 0, 0] : f32 from vector<1x1x1xf32>
    %239 = arith.addf %201, %238 : f32
    %c6_i32 = arith.constant 6 : i32
    %c8_i32_93 = arith.constant 8 : i32
    %240 = arith.muli %c6_i32, %c8_i32_93 : i32
    %241 = tpu.assume_multiple %240, 8 : i32
    %242 = arith.index_cast %241 : i32 to index
    %c0_94 = arith.constant 0 : index
    %243 = vector.load %arg11[%242, %c0_94] : memref<64x128xf32, #tpu.memory_space<vmem>>, vector<8x128xf32>
    %cst_95 = arith.constant dense<0.000000e+00> : vector<8x128xf32>
    %244 = tpu.matmul %208, %7, %cst_95 {dimension_numbers = #tpu.dot_dimension_numbers<[1], [0], [0], [1], [0, 0, 1, 1], [], []>} : vector<8x128xf32>, vector<128x128xf32>, vector<8x128xf32> -> vector<8x128xf32>
    %245 = arith.addf %243, %244 : vector<8x128xf32>
    %246 = math.tanh %245 : vector<8x128xf32>
    %cst_96 = arith.constant dense<0.000000e+00> : vector<8x128xf32>
    %247 = tpu.matmul %246, %8, %cst_96 {dimension_numbers = #tpu.dot_dimension_numbers<[1], [0], [0], [1], [0, 0, 1, 1], [], []>} : vector<8x128xf32>, vector<128x128xf32>, vector<8x128xf32> -> vector<8x128xf32>
    %248 = vector.broadcast %9 : vector<1x128xf32> to vector<8x128xf32>
    %249 = arith.addf %247, %248 : vector<8x128xf32>
    %cst_97 = arith.constant dense<0xFF800000> : vector<8xf32>
    %250 = vector.multi_reduction <maximumf>, %249, %cst_97 [1] : vector<8x128xf32> to vector<8xf32>
    %251 = vector.shape_cast %250 : vector<8xf32> to vector<8x1xf32>
    %252 = vector.broadcast %251 : vector<8x1xf32> to vector<8x128xf32>
    %253 = arith.subf %249, %252 : vector<8x128xf32>
    %254 = math.exp %253 : vector<8x128xf32>
    %cst_98 = arith.constant dense<0.000000e+00> : vector<8xf32>
    %255 = vector.multi_reduction <add>, %254, %cst_98 [1] : vector<8x128xf32> to vector<8xf32>
    %256 = vector.shape_cast %255 : vector<8xf32> to vector<8x1xf32>
    %257 = math.log %256 : vector<8x1xf32>
    %258 = arith.addf %257, %251 : vector<8x1xf32>
    %259 = arith.index_cast %c6_i32 : i32 to index
    %c0_99 = arith.constant 0 : index
    %c0_100 = arith.constant 0 : index
    %260 = vector.load %arg8[%259, %c0_99, %c0_100] : memref<8x8x1xi32, #tpu.memory_space<vmem>>, vector<1x8x1xi32>
    %261 = vector.shape_cast %260 : vector<1x8x1xi32> to vector<8x1xi32>
    %262 = vector.broadcast %261 : vector<8x1xi32> to vector<8x128xi32>
    %263 = arith.cmpi eq, %10, %262 : vector<8x128xi32>
    %cst_101 = arith.constant 0.000000e+00 : f32
    %264 = vector.broadcast %cst_101 : f32 to vector<8x128xf32>
    %265 = arith.select %263, %249, %264 : vector<8x128xi1>, vector<8x128xf32>
    %cst_102 = arith.constant dense<0.000000e+00> : vector<8xf32>
    %266 = vector.multi_reduction <add>, %265, %cst_102 [1] : vector<8x128xf32> to vector<8xf32>
    %267 = vector.shape_cast %266 : vector<8xf32> to vector<8x1xf32>
    %268 = arith.index_cast %c6_i32 : i32 to index
    %c0_103 = arith.constant 0 : index
    %c0_104 = arith.constant 0 : index
    %269 = vector.load %arg9[%268, %c0_103, %c0_104] : memref<8x8x1xf32, #tpu.memory_space<vmem>>, vector<1x8x1xf32>
    %270 = vector.shape_cast %269 : vector<1x8x1xf32> to vector<8x1xf32>
    %271 = arith.subf %258, %267 : vector<8x1xf32>
    %272 = arith.mulf %270, %271 : vector<8x1xf32>
    %273 = vector.shape_cast %272 : vector<8x1xf32> to vector<1x8x1xf32>
    %cst_105 = arith.constant dense<0.000000e+00> : vector<1xf32>
    %274 = vector.multi_reduction <add>, %273, %cst_105 [1, 2] : vector<1x8x1xf32> to vector<1xf32>
    %275 = vector.shape_cast %274 : vector<1xf32> to vector<1x1x1xf32>
    %276 = vector.extract %275[0, 0, 0] : f32 from vector<1x1x1xf32>
    %277 = arith.addf %239, %276 : f32
    %c7_i32 = arith.constant 7 : i32
    %c8_i32_106 = arith.constant 8 : i32
    %278 = arith.muli %c7_i32, %c8_i32_106 : i32
    %279 = tpu.assume_multiple %278, 8 : i32
    %280 = arith.index_cast %279 : i32 to index
    %c0_107 = arith.constant 0 : index
    %281 = vector.load %arg11[%280, %c0_107] : memref<64x128xf32, #tpu.memory_space<vmem>>, vector<8x128xf32>
    %cst_108 = arith.constant dense<0.000000e+00> : vector<8x128xf32>
    %282 = tpu.matmul %246, %7, %cst_108 {dimension_numbers = #tpu.dot_dimension_numbers<[1], [0], [0], [1], [0, 0, 1, 1], [], []>} : vector<8x128xf32>, vector<128x128xf32>, vector<8x128xf32> -> vector<8x128xf32>
    %283 = arith.addf %281, %282 : vector<8x128xf32>
    %284 = math.tanh %283 : vector<8x128xf32>
    %cst_109 = arith.constant dense<0.000000e+00> : vector<8x128xf32>
    %285 = tpu.matmul %284, %8, %cst_109 {dimension_numbers = #tpu.dot_dimension_numbers<[1], [0], [0], [1], [0, 0, 1, 1], [], []>} : vector<8x128xf32>, vector<128x128xf32>, vector<8x128xf32> -> vector<8x128xf32>
    %286 = vector.broadcast %9 : vector<1x128xf32> to vector<8x128xf32>
    %287 = arith.addf %285, %286 : vector<8x128xf32>
    %cst_110 = arith.constant dense<0xFF800000> : vector<8xf32>
    %288 = vector.multi_reduction <maximumf>, %287, %cst_110 [1] : vector<8x128xf32> to vector<8xf32>
    %289 = vector.shape_cast %288 : vector<8xf32> to vector<8x1xf32>
    %290 = vector.broadcast %289 : vector<8x1xf32> to vector<8x128xf32>
    %291 = arith.subf %287, %290 : vector<8x128xf32>
    %292 = math.exp %291 : vector<8x128xf32>
    %cst_111 = arith.constant dense<0.000000e+00> : vector<8xf32>
    %293 = vector.multi_reduction <add>, %292, %cst_111 [1] : vector<8x128xf32> to vector<8xf32>
    %294 = vector.shape_cast %293 : vector<8xf32> to vector<8x1xf32>
    %295 = math.log %294 : vector<8x1xf32>
    %296 = arith.addf %295, %289 : vector<8x1xf32>
    %297 = arith.index_cast %c7_i32 : i32 to index
    %c0_112 = arith.constant 0 : index
    %c0_113 = arith.constant 0 : index
    %298 = vector.load %arg8[%297, %c0_112, %c0_113] : memref<8x8x1xi32, #tpu.memory_space<vmem>>, vector<1x8x1xi32>
    %299 = vector.shape_cast %298 : vector<1x8x1xi32> to vector<8x1xi32>
    %300 = vector.broadcast %299 : vector<8x1xi32> to vector<8x128xi32>
    %301 = arith.cmpi eq, %10, %300 : vector<8x128xi32>
    %cst_114 = arith.constant 0.000000e+00 : f32
    %302 = vector.broadcast %cst_114 : f32 to vector<8x128xf32>
    %303 = arith.select %301, %287, %302 : vector<8x128xi1>, vector<8x128xf32>
    %cst_115 = arith.constant dense<0.000000e+00> : vector<8xf32>
    %304 = vector.multi_reduction <add>, %303, %cst_115 [1] : vector<8x128xf32> to vector<8xf32>
    %305 = vector.shape_cast %304 : vector<8xf32> to vector<8x1xf32>
    %306 = arith.index_cast %c7_i32 : i32 to index
    %c0_116 = arith.constant 0 : index
    %c0_117 = arith.constant 0 : index
    %307 = vector.load %arg9[%306, %c0_116, %c0_117] : memref<8x8x1xf32, #tpu.memory_space<vmem>>, vector<1x8x1xf32>
    %308 = vector.shape_cast %307 : vector<1x8x1xf32> to vector<8x1xf32>
    %309 = arith.subf %296, %305 : vector<8x1xf32>
    %310 = arith.mulf %308, %309 : vector<8x1xf32>
    %311 = vector.shape_cast %310 : vector<8x1xf32> to vector<1x8x1xf32>
    %cst_118 = arith.constant dense<0.000000e+00> : vector<1xf32>
    %312 = vector.multi_reduction <add>, %311, %cst_118 [1, 2] : vector<1x8x1xf32> to vector<1xf32>
    %313 = vector.shape_cast %312 : vector<1xf32> to vector<1x1x1xf32>
    %314 = vector.extract %313[0, 0, 0] : f32 from vector<1x1x1xf32>
    %315 = arith.addf %277, %314 : f32
    %c8_i32_119 = arith.constant 8 : i32
    %cst_120 = arith.constant 5.000000e-01 : f32
    %316 = arith.mulf %315, %cst_120 : f32
    %317 = vector.broadcast %316 : f32 to vector<8x128xf32>
    %c0_121 = arith.constant 0 : index
    %c0_122 = arith.constant 0 : index
    %318 = vector.load %arg10[%c0_121, %c0_122] : memref<8x128xf32, #tpu.memory_space<vmem>>, vector<8x128xf32>
    tpu.vector_store %arg10[%c0_121, %c0_122], %317 {strides = array<i32>} : memref<8x128xf32, #tpu.memory_space<vmem>>, vector<8x128xf32>,
    return
  }
  func.func @transform_0(%arg0: i32) -> (i32, i32) {
    %c0_i32 = arith.constant 0 : i32
    %c0_i32_0 = arith.constant 0 : i32
    %c0_i32_1 = arith.constant 0 : i32
    return %c0_i32, %c0_i32_0 : i32, i32
  }
  func.func @transform_1(%arg0: i32) -> (i32, i32) {
    %c0_i32 = arith.constant 0 : i32
    %c0_i32_0 = arith.constant 0 : i32
    %c0_i32_1 = arith.constant 0 : i32
    return %c0_i32, %c0_i32_0 : i32, i32
  }
  func.func @transform_2(%arg0: i32) -> (i32, i32) {
    %c0_i32 = arith.constant 0 : i32
    %c0_i32_0 = arith.constant 0 : i32
    %c0_i32_1 = arith.constant 0 : i32
    return %c0_i32, %c0_i32_0 : i32, i32
  }
  func.func @transform_3(%arg0: i32) -> (i32, i32) {
    %c0_i32 = arith.constant 0 : i32
    %c0_i32_0 = arith.constant 0 : i32
    %c0_i32_1 = arith.constant 0 : i32
    return %c0_i32, %c0_i32_0 : i32, i32
  }
  func.func @transform_4(%arg0: i32) -> (i32, i32) {
    %c0_i32 = arith.constant 0 : i32
    %c0_i32_0 = arith.constant 0 : i32
    %c0_i32_1 = arith.constant 0 : i32
    return %c0_i32, %c0_i32_0 : i32, i32
  }
  func.func @transform_5(%arg0: i32) -> (i32, i32) {
    %c0_i32 = arith.constant 0 : i32
    %c0_i32_0 = arith.constant 0 : i32
    %c0_i32_1 = arith.constant 0 : i32
    return %c0_i32, %c0_i32_0 : i32, i32
  }
  func.func @transform_6(%arg0: i32) -> (i32, i32) {
    %c0_i32 = arith.constant 0 : i32
    %c0_i32_0 = arith.constant 0 : i32
    %c0_i32_1 = arith.constant 0 : i32
    return %c0_i32, %c0_i32_0 : i32, i32
  }
  func.func @transform_7(%arg0: i32) -> (i32, i32, i32) {
    %c0_i32 = arith.constant 0 : i32
    %c0_i32_0 = arith.constant 0 : i32
    %c0_i32_1 = arith.constant 0 : i32
    %c0_i32_2 = arith.constant 0 : i32
    return %c0_i32, %c0_i32_0, %c0_i32_1 : i32, i32, i32
  }
  func.func @transform_8(%arg0: i32) -> (i32, i32, i32) {
    %c0_i32 = arith.constant 0 : i32
    %c0_i32_0 = arith.constant 0 : i32
    %c0_i32_1 = arith.constant 0 : i32
    %c0_i32_2 = arith.constant 0 : i32
    return %c0_i32, %c0_i32_0, %c0_i32_1 : i32, i32, i32
  }
  func.func @transform_9(%arg0: i32) -> (i32, i32) {
    %c0_i32 = arith.constant 0 : i32
    %c0_i32_0 = arith.constant 0 : i32
    %c0_i32_1 = arith.constant 0 : i32
    return %c0_i32, %c0_i32_0 : i32, i32
  }
}

</mosaic_0001>

<llo_original>
// kernel: tpu_custom_call.1
$region0: #{tpu_custom_call.1}
  #allocation0 [shape = 'u32[]', space=smem, size = 0x4, offset = 0x4, fixed_abs, tag = 'smem constant byte address 0x4 - core index']
  #allocation1 [shape = 'u32[144,128]{1,0:T(1,128)}', space=vmem, size = 0x12000, scoped, tag = 'internal scratch']
  #allocation2 [shape = 'f32[64,128]{1,0:T(8,128)}', space=vmem, size = 0x8000, scoped, tag = 'scratch operand']
  %s0 = inlined_call_operand.hbm [shape: f32[64,128], index: 0, kind: input, shape index: {}]
  %s1 = inlined_call_operand.vmem [shape: f32[8,128], index: 1, kind: input, shape index: {}]
  %s2 = inlined_call_operand.vmem [shape: f32[128,128], index: 2, kind: input, shape index: {}]
  %s3 = inlined_call_operand.hbm [shape: f32[128,128], index: 3, kind: input, shape index: {}]
  %s4 = inlined_call_operand.vmem [shape: f32[1,128], index: 4, kind: input, shape index: {}]
  %s5 = inlined_call_operand.hbm [shape: f32[128,128], index: 5, kind: input, shape index: {}]
  %s6 = inlined_call_operand.vmem [shape: f32[1,128], index: 6, kind: input, shape index: {}]
  %s7 = inlined_call_operand.vmem [shape: s32[8,8,1], index: 7, kind: input, shape index: {}]
  %s8 = inlined_call_operand.vmem [shape: f32[8,8,1], index: 8, kind: input, shape index: {}]
  %s9 = inlined_call_operand.hbm [shape: f32[8,128], index: 9, kind: output, shape index: {}]
  %s10 = sld [smem:[#allocation0]]
  $region58: #{tpu_custom_call.1} parent=0
    _
  %s12 = ssub.s32 1, %s10
  %s13 = scalar_select 0, %s12, %s10
  $region1: #{tpu_custom_call.1} parent=0
    #allocation3 [shape = 'u8[32768]{0}', space=vmem, size = 0x8000, scoped, tag = 'input window, operand 0, single buffered']
    #allocation4 [shape = 's32[1]{0}', space=sflag, size = 0x4, scoped, tag = 'scoped memory for tpu_custom_call.1']
    #allocation5 [shape = 's32[1]{0}', space=sflag, size = 0x4, scoped, tag = 'scoped memory for tpu_custom_call.1']
    #allocation6 [shape = 'u8[65536]{0}', space=vmem, size = 0x10000, scoped, tag = 'input window, operand 3, single buffered']
    #allocation7 [shape = 's32[1]{0}', space=sflag, size = 0x4, scoped, tag = 'scoped memory for tpu_custom_call.1']
    #allocation8 [shape = 'u8[65536]{0}', space=vmem, size = 0x10000, scoped, tag = 'input window, operand 5, single buffered']
    #allocation9 [shape = 'u8[4096]{0}', space=vmem, size = 0x1000, scoped, tag = 'output window, operand 0, single buffered']
    %14 = vsyncpa [#allocation4], 0
    %15 = vsyncpa [#allocation7], 0
    %16 = vsyncpa [#allocation5], 0
    // Predicated region
    $region2: #{tpu_custom_call.1} parent=1 // pred_check
      _
    $region3: #{tpu_custom_call.1} parent=1 // pred_check_branch
      %18 = sbr.rel (0) target = $region5
    $region4: #{tpu_custom_call.1} parent=1 // pred_region
      %s20 = ssub.s32 1024, 1024
      %21 = vsyncadd [#allocation4], %s20
      %s22 = sshll.u32 [#allocation3], 4
      %s23 = int_to_ptr.vmem [resolvable:$true] %s22
      %28 = dma.hbm_to_vmem [thread:$0]  %s0, 1024, %s23, [#allocation4], 128, 128, 8
    $region5: #{tpu_custom_call.1} parent=1 // pred_fallthru
      _
    // Predicated region
    $region6: #{tpu_custom_call.1} parent=1 // pred_check
      _
    $region7: #{tpu_custom_call.1} parent=1 // pred_check_branch
      %30 = sbr.rel (0) target = $region9
    $region8: #{tpu_custom_call.1} parent=1 // pred_region
      _
    $region9: #{tpu_custom_call.1} parent=1 // pred_fallthru
      _
    // Predicated region
    $region10: #{tpu_custom_call.1} parent=1 // pred_check
      _
    $region11: #{tpu_custom_call.1} parent=1 // pred_check_branch
      %32 = sbr.rel (0) target = $region13
    $region12: #{tpu_custom_call.1} parent=1 // pred_region
      _
    $region13: #{tpu_custom_call.1} parent=1 // pred_fallthru
      _
    // Predicated region
    $region14: #{tpu_custom_call.1} parent=1 // pred_check
      _
    $region15: #{tpu_custom_call.1} parent=1 // pred_check_branch
      %34 = sbr.rel (0) target = $region17
    $region16: #{tpu_custom_call.1} parent=1 // pred_region
      %s36 = ssub.s32 2048, 2048
      %37 = vsyncadd [#allocation7], %s36
      %s38 = sshll.u32 [#allocation6], 4
      %s39 = int_to_ptr.vmem [resolvable:$true] %s38
      %44 = dma.hbm_to_vmem [thread:$0]  %s3, 2048, %s39, [#allocation7], 128, 128, 8
    $region17: #{tpu_custom_call.1} parent=1 // pred_fallthru
      _
    // Predicated region
    $region18: #{tpu_custom_call.1} parent=1 // pred_check
      _
    $region19: #{tpu_custom_call.1} parent=1 // pred_check_branch
      %46 = sbr.rel (0) target = $region21
    $region20: #{tpu_custom_call.1} parent=1 // pred_region
      _
    $region21: #{tpu_custom_call.1} parent=1 // pred_fallthru
      _
    // Predicated region
    $region22: #{tpu_custom_call.1} parent=1 // pred_check
      _
    $region23: #{tpu_custom_call.1} parent=1 // pred_check_branch
      %48 = sbr.rel (0) target = $region25
    $region24: #{tpu_custom_call.1} parent=1 // pred_region
      %s50 = ssub.s32 2048, 2048
      %51 = vsyncadd [#allocation7], %s50
      %s52 = sshll.u32 [#allocation8], 4
      %s53 = int_to_ptr.vmem [resolvable:$true] %s52
      %58 = dma.hbm_to_vmem [thread:$0]  %s5, 2048, %s53, [#allocation7], 128, 128, 8
    $region25: #{tpu_custom_call.1} parent=1 // pred_fallthru
      _
    // Predicated region
    $region26: #{tpu_custom_call.1} parent=1 // pred_check
      _
    $region27: #{tpu_custom_call.1} parent=1 // pred_check_branch
      %60 = sbr.rel (0) target = $region29
    $region28: #{tpu_custom_call.1} parent=1 // pred_region
      _
    $region29: #{tpu_custom_call.1} parent=1 // pred_fallthru
      _
    // Predicated region
    $region30: #{tpu_custom_call.1} parent=1 // pred_check
      _
    $region31: #{tpu_custom_call.1} parent=1 // pred_check_branch
      %62 = sbr.rel (0) target = $region33
    $region32: #{tpu_custom_call.1} parent=1 // pred_region
      _
    $region33: #{tpu_custom_call.1} parent=1 // pred_fallthru
      _
    // Predicated region
    $region34: #{tpu_custom_call.1} parent=1 // pred_check
      _
    $region35: #{tpu_custom_call.1} parent=1 // pred_check_branch
      %64 = sbr.rel (0) target = $region37
    $region36: #{tpu_custom_call.1} parent=1 // pred_region
      _
    $region37: #{tpu_custom_call.1} parent=1 // pred_fallthru
      _
    // Predicated region
    $region38: #{tpu_custom_call.1} parent=1 // pred_check
      _
    $region39: #{tpu_custom_call.1} parent=1 // pred_check_branch
      %66 = sbr.rel (0) target = $region41
    $region40: #{tpu_custom_call.1} parent=1 // pred_region
      %67 = dma.done [#allocation4], 1024
    $region41: #{tpu_custom_call.1} parent=1 // pred_fallthru
      _
    // Predicated region
    $region42: #{tpu_custom_call.1} parent=1 // pred_check
      _
    $region43: #{tpu_custom_call.1} parent=1 // pred_check_branch
      %69 = sbr.rel (0) target = $region45
    $region44: #{tpu_custom_call.1} parent=1 // pred_region
      %70 = dma.done [#allocation7], 2048
    $region45: #{tpu_custom_call.1} parent=1 // pred_fallthru
      _
    // Predicated region
    $region46: #{tpu_custom_call.1} parent=1 // pred_check
      _
    $region47: #{tpu_custom_call.1} parent=1 // pred_check_branch
      %72 = sbr.rel (0) target = $region49
    $region48: #{tpu_custom_call.1} parent=1 // pred_region
      %73 = dma.done [#allocation7], 2048
    $region49: #{tpu_custom_call.1} parent=1 // pred_fallthru
      _
    %v74 = vld [vmem:[#allocation3] sm:$0xff]
    %v75 = vld [vmem:[#allocation3 + $0x8] sm:$0xff]
    %v76 = vld [vmem:[#allocation3 + $0x10] sm:$0xff]
    %v77 = vld [vmem:[#allocation3 + $0x18] sm:$0xff]
    %v78 = vld [vmem:[#allocation3 + $0x20] sm:$0xff]
    %v79 = vld [vmem:[#allocation3 + $0x28] sm:$0xff]
    %v80 = vld [vmem:[#allocation3 + $0x30] sm:$0xff]
    %v81 = vld [vmem:[#allocation3 + $0x38] sm:$0xff]
    %v82 = vld [vmem:[%s2] sm:$0xff]
    %v83 = vld [vmem:[%s2 + $0x8] sm:$0xff]
    %v84 = vld [vmem:[%s2 + $0x10] sm:$0xff]
    %v85 = vld [vmem:[%s2 + $0x18] sm:$0xff]
    %v86 = vld [vmem:[%s2 + $0x20] sm:$0xff]
    %v87 = vld [vmem:[%s2 + $0x28] sm:$0xff]
    %v88 = vld [vmem:[%s2 + $0x30] sm:$0xff]
    %v89 = vld [vmem:[%s2 + $0x38] sm:$0xff]
    %v90 = vld [vmem:[%s2 + $0x40] sm:$0xff]
    %v91 = vld [vmem:[%s2 + $0x48] sm:$0xff]
    %v92 = vld [vmem:[%s2 + $0x50] sm:$0xff]
    %v93 = vld [vmem:[%s2 + $0x58] sm:$0xff]
    %v94 = vld [vmem:[%s2 + $0x60] sm:$0xff]
    %v95 = vld [vmem:[%s2 + $0x68] sm:$0xff]
    %v96 = vld [vmem:[%s2 + $0x70] sm:$0xff]
    %v97 = vld [vmem:[%s2 + $0x78] sm:$0xff]
    %v98 = vld [vmem:[%s4] sm:$0x1]
    %v100 = vlaneseq
    %v101 = vshrl.u32 %v100, 7
    %v102 = vsub.s32 0, %v101
    %v103 = vrot.slane %v98, %v102
    %105 = vmatprep.subr.mxu0 0.0
    %106 = vmatpush1.msra.mxu0 %v82
    %107 = vmatprep.subr.mxu0 0.0
    %108 = vmatpush1.msra.mxu0 %v83
    %109 = vmatprep.subr.mxu0 0.0
    %110 = vmatpush1.msra.mxu0 %v84
    %111 = vmatprep.subr.mxu0 0.0
    %112 = vmatpush1.msra.mxu0 %v85
    %113 = vmatprep.subr.mxu0 0.0
    %114 = vmatpush1.msra.mxu0 %v86
    %115 = vmatprep.subr.mxu0 0.0
    %116 = vmatpush1.msra.mxu0 %v87
    %117 = vmatprep.subr.mxu0 0.0
    %118 = vmatpush1.msra.mxu0 %v88
    %119 = vmatprep.subr.mxu0 0.0
    %120 = vmatpush1.msra.mxu0 %v89
    %121 = vmatprep.subr.mxu0 0.0
    %122 = vmatpush1.msra.mxu0 %v90
    %123 = vmatprep.subr.mxu0 0.0
    %124 = vmatpush1.msra.mxu0 %v91
    %125 = vmatprep.subr.mxu0 0.0
    %126 = vmatpush1.msra.mxu0 %v92
    %127 = vmatprep.subr.mxu0 0.0
    %128 = vmatpush1.msra.mxu0 %v93
    %129 = vmatprep.subr.mxu0 0.0
    %130 = vmatpush1.msra.mxu0 %v94
    %131 = vmatprep.subr.mxu0 0.0
    %132 = vmatpush1.msra.mxu0 %v95
    %133 = vmatprep.subr.mxu0 0.0
    %134 = vmatpush1.msra.mxu0 %v96
    %135 = vmatprep.subr.mxu0 0.0
    %136 = vmatpush1.msra.mxu0 %v97
    %137 = vmatprep.subr.mxu0 0.0
    %138 = vmatpush1.msra.mxu0 0.0
    %139 = vmatprep.subr.mxu0 0.0
    %140 = vmatpush1.msra.mxu0 0.0
    %141 = vmatprep.subr.mxu0 0.0
    %142 = vmatpush1.msra.mxu0 0.0
    %143 = vmatprep.subr.mxu0 0.0
    %144 = vmatpush1.msra.mxu0 0.0
    %145 = vmatprep.subr.mxu0 0.0
    %146 = vmatpush1.msra.mxu0 0.0
    %147 = vmatprep.subr.mxu0 0.0
    %148 = vmatpush1.msra.mxu0 0.0
    %149 = vmatprep.subr.mxu0 0.0
    %150 = vmatpush1.msra.mxu0 0.0
    %151 = vmatprep.subr.mxu0 0.0
    %152 = vmatpush1.msra.mxu0 0.0
    %153 = vmatprep.subr.mxu0 0.0
    %154 = vmatpush1.msra.mxu0 0.0
    %155 = vmatprep.subr.mxu0 0.0
    %156 = vmatpush1.msra.mxu0 0.0
    %157 = vmatprep.subr.mxu0 0.0
    %158 = vmatpush1.msra.mxu0 0.0
    %159 = vmatprep.subr.mxu0 0.0
    %160 = vmatpush1.msra.mxu0 0.0
    %161 = vmatprep.subr.mxu0 0.0
    %162 = vmatpush1.msra.mxu0 0.0
    %163 = vmatprep.subr.mxu0 0.0
    %164 = vmatpush1.msra.mxu0 0.0
    %165 = vmatprep.subr.mxu0 0.0
    %166 = vmatpush1.msra.mxu0 0.0
    %167 = vmatprep.subr.mxu0 0.0
    %168 = vmatpush1.msra.mxu0 0.0
    %169 = vmatprep.mubr.f32.mxu0 0.0
    %170 = vmatmul.mubr.f32.gmra.mrb[0].mxu0 %v74
    %v171 = vpop.f32.mrb[0].mxu0
    %v172 = vadd.f32 %v103, %v171
    %v173 = vpop.f32.mrb[0].mxu0
    %174 = vmatprep.mubr.f32.mxu0 0.0
    %175 = vmatmul.mubr.f32.gmra.mrb[0].mxu0 %v75
    %v176 = vpop.f32.mrb[0].mxu0
    %v177 = vadd.f32 %v103, %v176
    %v178 = vpop.f32.mrb[0].mxu0
    %179 = vmatprep.mubr.f32.mxu0 0.0
    %180 = vmatmul.mubr.f32.gmra.mrb[0].mxu0 %v76
    %v181 = vpop.f32.mrb[0].mxu0
    %v182 = vadd.f32 %v103, %v181
    %v183 = vpop.f32.mrb[0].mxu0
    %184 = vmatprep.mubr.f32.mxu0 0.0
    %185 = vmatmul.mubr.f32.gmra.mrb[0].mxu0 %v77
    %v186 = vpop.f32.mrb[0].mxu0
    %v187 = vadd.f32 %v103, %v186
    %v188 = vpop.f32.mrb[0].mxu0
    %189 = vmatprep.mubr.f32.mxu0 0.0
    %190 = vmatmul.mubr.f32.gmra.mrb[0].mxu0 %v78
    %v191 = vpop.f32.mrb[0].mxu0
    %v192 = vadd.f32 %v103, %v191
    %v193 = vpop.f32.mrb[0].mxu0
    %194 = vmatprep.mubr.f32.mxu0 0.0
    %195 = vmatmul.mubr.f32.gmra.mrb[0].mxu0 %v79
    %v196 = vpop.f32.mrb[0].mxu0
    %v197 = vadd.f32 %v103, %v196
    %v198 = vpop.f32.mrb[0].mxu0
    %199 = vmatprep.mubr.f32.mxu0 0.0
    %200 = vmatmul.mubr.f32.gmra.mrb[0].mxu0 %v80
    %v201 = vpop.f32.mrb[0].mxu0
    %v202 = vadd.f32 %v103, %v201
    %v203 = vpop.f32.mrb[0].mxu0
    %204 = vmatprep.mubr.f32.mxu0 0.0
    %205 = vmatmul.mubr.f32.gmra.mrb[0].mxu0 %v81
    %v206 = vpop.f32.mrb[0].mxu0
    %v207 = vadd.f32 %v103, %v206
    %v208 = vpop.f32.mrb[0].mxu0
    %209 = vdwg.mxu0
    %210 = vst [vmem:[#allocation2] sm:$0xff] %v172
    %211 = vst [vmem:[#allocation2 + $0x8] sm:$0xff] %v177
    %212 = vst [vmem:[#allocation2 + $0x10] sm:$0xff] %v182
    %213 = vst [vmem:[#allocation2 + $0x18] sm:$0xff] %v187
    %214 = vst [vmem:[#allocation2 + $0x20] sm:$0xff] %v192
    %215 = vst [vmem:[#allocation2 + $0x28] sm:$0xff] %v197
    %216 = vst [vmem:[#allocation2 + $0x30] sm:$0xff] %v202
    %217 = vst [vmem:[#allocation2 + $0x38] sm:$0xff] %v207
    %v218 = vld [vmem:[#allocation6] sm:$0xff]
    %v219 = vld [vmem:[#allocation6 + $0x8] sm:$0xff]
    %v220 = vld [vmem:[#allocation6 + $0x10] sm:$0xff]
    %v221 = vld [vmem:[#allocation6 + $0x18] sm:$0xff]
    %v222 = vld [vmem:[#allocation6 + $0x20] sm:$0xff]
    %v223 = vld [vmem:[#allocation6 + $0x28] sm:$0xff]
    %v224 = vld [vmem:[#allocation6 + $0x30] sm:$0xff]
    %v225 = vld [vmem:[#allocation6 + $0x38] sm:$0xff]
    %v226 = vld [vmem:[#allocation6 + $0x40] sm:$0xff]
    %v227 = vld [vmem:[#allocation6 + $0x48] sm:$0xff]
    %v228 = vld [vmem:[#allocation6 + $0x50] sm:$0xff]
    %v229 = vld [vmem:[#allocation6 + $0x58] sm:$0xff]
    %v230 = vld [vmem:[#allocation6 + $0x60] sm:$0xff]
    %v231 = vld [vmem:[#allocation6 + $0x68] sm:$0xff]
    %v232 = vld [vmem:[#allocation6 + $0x70] sm:$0xff]
    %v233 = vld [vmem:[#allocation6 + $0x78] sm:$0xff]
    %v234 = vld [vmem:[#allocation8] sm:$0xff]
    %v235 = vld [vmem:[#allocation8 + $0x8] sm:$0xff]
    %v236 = vld [vmem:[#allocation8 + $0x10] sm:$0xff]
    %v237 = vld [vmem:[#allocation8 + $0x18] sm:$0xff]
    %v238 = vld [vmem:[#allocation8 + $0x20] sm:$0xff]
    %v239 = vld [vmem:[#allocation8 + $0x28] sm:$0xff]
    %v240 = vld [vmem:[#allocation8 + $0x30] sm:$0xff]
    %v241 = vld [vmem:[#allocation8 + $0x38] sm:$0xff]
    %v242 = vld [vmem:[#allocation8 + $0x40] sm:$0xff]
    %v243 = vld [vmem:[#allocation8 + $0x48] sm:$0xff]
    %v244 = vld [vmem:[#allocation8 + $0x50] sm:$0xff]
    %v245 = vld [vmem:[#allocation8 + $0x58] sm:$0xff]
    %v246 = vld [vmem:[#allocation8 + $0x60] sm:$0xff]
    %v247 = vld [vmem:[#allocation8 + $0x68] sm:$0xff]
    %v248 = vld [vmem:[#allocation8 + $0x70] sm:$0xff]
    %v249 = vld [vmem:[#allocation8 + $0x78] sm:$0xff]
    %v250 = vld [vmem:[%s6] sm:$0x1]
    %v251 = vlaneseq
    %v252 = vand.u32 %v251, 127
    %v253 = vld [vmem:[%s1] sm:$0xff]
    %v254 = vld [vmem:[#allocation2] sm:$0xff]
    %255 = vmatprep.subr.mxu0 0.0
    %256 = vmatpush1.msra.mxu0 %v218
    %257 = vmatprep.subr.mxu0 0.0
    %258 = vmatpush1.msra.mxu0 %v219
    %259 = vmatprep.subr.mxu0 0.0
    %260 = vmatpush1.msra.mxu0 %v220
    %261 = vmatprep.subr.mxu0 0.0
    %262 = vmatpush1.msra.mxu0 %v221
    %263 = vmatprep.subr.mxu0 0.0
    %264 = vmatpush1.msra.mxu0 %v222
    %265 = vmatprep.subr.mxu0 0.0
    %266 = vmatpush1.msra.mxu0 %v223
    %267 = vmatprep.subr.mxu0 0.0
    %268 = vmatpush1.msra.mxu0 %v224
    %269 = vmatprep.subr.mxu0 0.0
    %270 = vmatpush1.msra.mxu0 %v225
    %271 = vmatprep.subr.mxu0 0.0
    %272 = vmatpush1.msra.mxu0 %v226
    %273 = vmatprep.subr.mxu0 0.0
    %274 = vmatpush1.msra.mxu0 %v227
    %275 = vmatprep.subr.mxu0 0.0
    %276 = vmatpush1.msra.mxu0 %v228
    %277 = vmatprep.subr.mxu0 0.0
    %278 = vmatpush1.msra.mxu0 %v229
    %279 = vmatprep.subr.mxu0 0.0
    %280 = vmatpush1.msra.mxu0 %v230
    %281 = vmatprep.subr.mxu0 0.0
    %282 = vmatpush1.msra.mxu0 %v231
    %283 = vmatprep.subr.mxu0 0.0
    %284 = vmatpush1.msra.mxu0 %v232
    %285 = vmatprep.subr.mxu0 0.0
    %286 = vmatpush1.msra.mxu0 %v233
    %287 = vmatprep.subr.mxu0 0.0
    %288 = vmatpush1.msra.mxu0 0.0
    %289 = vmatprep.subr.mxu0 0.0
    %290 = vmatpush1.msra.mxu0 0.0
    %291 = vmatprep.subr.mxu0 0.0
    %292 = vmatpush1.msra.mxu0 0.0
    %293 = vmatprep.subr.mxu0 0.0
    %294 = vmatpush1.msra.mxu0 0.0
    %295 = vmatprep.subr.mxu0 0.0
    %296 = vmatpush1.msra.mxu0 0.0
    %297 = vmatprep.subr.mxu0 0.0
    %298 = vmatpush1.msra.mxu0 0.0
    %299 = vmatprep.subr.mxu0 0.0
    %300 = vmatpush1.msra.mxu0 0.0
    %301 = vmatprep.subr.mxu0 0.0
    %302 = vmatpush1.msra.mxu0 0.0
    %303 = vmatprep.subr.mxu0 0.0
    %304 = vmatpush1.msra.mxu0 0.0
    %305 = vmatprep.subr.mxu0 0.0
    %306 = vmatpush1.msra.mxu0 0.0
    %307 = vmatprep.subr.mxu0 0.0
    %308 = vmatpush1.msra.mxu0 0.0
    %309 = vmatprep.subr.mxu0 0.0
    %310 = vmatpush1.msra.mxu0 0.0
    %311 = vmatprep.subr.mxu0 0.0
    %312 = vmatpush1.msra.mxu0 0.0
    %313 = vmatprep.subr.mxu0 0.0
    %314 = vmatpush1.msra.mxu0 0.0
    %315 = vmatprep.subr.mxu0 0.0
    %316 = vmatpush1.msra.mxu0 0.0
    %317 = vmatprep.subr.mxu0 0.0
    %318 = vmatpush1.msra.mxu0 0.0
    %319 = vmatprep.mubr.f32.mxu0 0.0
    %320 = vmatmul.mubr.f32.gmra.mrb[0].mxu0 %v253
    %v321 = vpop.f32.mrb[0].mxu0
    %v322 = vadd.f32 0.0, %v321
    %v323 = vpop.f32.mrb[0].mxu0
    %324 = vdwg.mxu0
    %v325 = vadd.f32 %v254, %v322
    %v326 = vtanh.pop %v325
    %v328 = vlaneseq
    %v329 = vshrl.u32 %v328, 7
    %v330 = vsub.s32 0, %v329
    %v331 = vrot.slane %v250, %v330
    %333 = vmatprep.subr.mxu0 0.0
    %334 = vmatpush1.msra.mxu0 %v234
    %335 = vmatprep.subr.mxu0 0.0
    %336 = vmatpush1.msra.mxu0 %v235
    %337 = vmatprep.subr.mxu0 0.0
    %338 = vmatpush1.msra.mxu0 %v236
    %339 = vmatprep.subr.mxu0 0.0
    %340 = vmatpush1.msra.mxu0 %v237
    %341 = vmatprep.subr.mxu0 0.0
    %342 = vmatpush1.msra.mxu0 %v238
    %343 = vmatprep.subr.mxu0 0.0
    %344 = vmatpush1.msra.mxu0 %v239
    %345 = vmatprep.subr.mxu0 0.0
    %346 = vmatpush1.msra.mxu0 %v240
    %347 = vmatprep.subr.mxu0 0.0
    %348 = vmatpush1.msra.mxu0 %v241
    %349 = vmatprep.subr.mxu0 0.0
    %350 = vmatpush1.msra.mxu0 %v242
    %351 = vmatprep.subr.mxu0 0.0
    %352 = vmatpush1.msra.mxu0 %v243
    %353 = vmatprep.subr.mxu0 0.0
    %354 = vmatpush1.msra.mxu0 %v244
    %355 = vmatprep.subr.mxu0 0.0
    %356 = vmatpush1.msra.mxu0 %v245
    %357 = vmatprep.subr.mxu0 0.0
    %358 = vmatpush1.msra.mxu0 %v246
    %359 = vmatprep.subr.mxu0 0.0
    %360 = vmatpush1.msra.mxu0 %v247
    %361 = vmatprep.subr.mxu0 0.0
    %362 = vmatpush1.msra.mxu0 %v248
    %363 = vmatprep.subr.mxu0 0.0
    %364 = vmatpush1.msra.mxu0 %v249
    %365 = vmatprep.subr.mxu0 0.0
    %366 = vmatpush1.msra.mxu0 0.0
    %367 = vmatprep.subr.mxu0 0.0
    %368 = vmatpush1.msra.mxu0 0.0
    %369 = vmatprep.subr.mxu0 0.0
    %370 = vmatpush1.msra.mxu0 0.0
    %371 = vmatprep.subr.mxu0 0.0
    %372 = vmatpush1.msra.mxu0 0.0
    %373 = vmatprep.subr.mxu0 0.0
    %374 = vmatpush1.msra.mxu0 0.0
    %375 = vmatprep.subr.mxu0 0.0
    %376 = vmatpush1.msra.mxu0 0.0
    %377 = vmatprep.subr.mxu0 0.0
    %378 = vmatpush1.msra.mxu0 0.0
    %379 = vmatprep.subr.mxu0 0.0
    %380 = vmatpush1.msra.mxu0 0.0
    %381 = vmatprep.subr.mxu0 0.0
    %382 = vmatpush1.msra.mxu0 0.0
    %383 = vmatprep.subr.mxu0 0.0
    %384 = vmatpush1.msra.mxu0 0.0
    %385 = vmatprep.subr.mxu0 0.0
    %386 = vmatpush1.msra.mxu0 0.0
    %387 = vmatprep.subr.mxu0 0.0
    %388 = vmatpush1.msra.mxu0 0.0
    %389 = vmatprep.subr.mxu0 0.0
    %390 = vmatpush1.msra.mxu0 0.0
    %391 = vmatprep.subr.mxu0 0.0
    %392 = vmatpush1.msra.mxu0 0.0
    %393 = vmatprep.subr.mxu0 0.0
    %394 = vmatpush1.msra.mxu0 0.0
    %395 = vmatprep.subr.mxu0 0.0
    %396 = vmatpush1.msra.mxu0 0.0
    %397 = vmatprep.mubr.f32.mxu0 0.0
    %398 = vmatmul.mubr.f32.gmra.mrb[0].mxu0 %v326
    %v399 = vpop.f32.mrb[0].mxu0
    %v400 = vadd.f32 %v331, %v399
    %v401 = vpop.f32.mrb[0].mxu0
    %402 = vdwg.mxu0
    %403 = vmax.xlane.f32.xlu0 %v400
    %v404 = vpop.xlane.xlu0 %403
    %v405 = vsub.f32 %v400, %v404
    %v406 = vmul.f32 %v405, 1.442695
    %v407 = vpow.pop %v406
    %408 = vadd.xlane.f32.xlu0 %v407
    %v409 = vpop.xlane.xlu0 %408
    %v410 = vlog2.pop %v409
    %v411 = vmul.f32 %v410, 0.6931472
    %v412 = vadd.f32 %v411, %v404
    %v413 = vld [vmem:[%s7] sm:$0xff]
    %414 = vset.pattern.permute.xlu0 0
    %415 = vperm.xlu0 %414, %v413
    %v416 = vpop.permute.xlu0 %415
    %vm417 = vcmp.eq.s32.totalorder %v252, %v416
    %v418 = vsel %vm417, %v400, 0.0
    %419 = vadd.xlane.f32.xlu0 %v418
    %v420 = vpop.xlane.xlu0 %419
    %v421 = vld [vmem:[%s8] sm:$0xff]
    %v422 = vsub.f32 %v412, %v420
    %v423 = vmul.f32 %v421, %v422
    %vm424 = vcmask 7168
    %v425 = vsel %vm424, %v423, 0.0
    %426 = vadd.xlane.f32.xlu0 %v425
    %v427 = vpop.xlane.xlu0 %426
    %v428 = vrot.slane %v427, 4
    %v429 = vadd.f32 %v427, %v428
    %v430 = vrot.slane %v429, 2
    %v431 = vadd.f32 %v429, %v430
    %v432 = vrot.slane %v431, 1
    %v433 = vadd.f32 %v431, %v432
    %s434 = vtos %v433
    %s435 = sadd.f32 %s434, 0.0
    %s436 = scalar_lea.vmem [#allocation2], 8
    %v437 = vld [vmem:[%s436] sm:$0xff]
    %438 = vmatprep.subr.mxu0 0.0
    %439 = vmatpush1.msra.mxu0 %v218
    %440 = vmatprep.subr.mxu0 0.0
    %441 = vmatpush1.msra.mxu0 %v219
    %442 = vmatprep.subr.mxu0 0.0
    %443 = vmatpush1.msra.mxu0 %v220
    %444 = vmatprep.subr.mxu0 0.0
    %445 = vmatpush1.msra.mxu0 %v221
    %446 = vmatprep.subr.mxu0 0.0
    %447 = vmatpush1.msra.mxu0 %v222
    %448 = vmatprep.subr.mxu0 0.0
    %449 = vmatpush1.msra.mxu0 %v223
    %450 = vmatprep.subr.mxu0 0.0
    %451 = vmatpush1.msra.mxu0 %v224
    %452 = vmatprep.subr.mxu0 0.0
    %453 = vmatpush1.msra.mxu0 %v225
    %454 = vmatprep.subr.mxu0 0.0
    %455 = vmatpush1.msra.mxu0 %v226
    %456 = vmatprep.subr.mxu0 0.0
    %457 = vmatpush1.msra.mxu0 %v227
    %458 = vmatprep.subr.mxu0 0.0
    %459 = vmatpush1.msra.mxu0 %v228
    %460 = vmatprep.subr.mxu0 0.0
    %461 = vmatpush1.msra.mxu0 %v229
    %462 = vmatprep.subr.mxu0 0.0
    %463 = vmatpush1.msra.mxu0 %v230
    %464 = vmatprep.subr.mxu0 0.0
    %465 = vmatpush1.msra.mxu0 %v231
    %466 = vmatprep.subr.mxu0 0.0
    %467 = vmatpush1.msra.mxu0 %v232
    %468 = vmatprep.subr.mxu0 0.0
    %469 = vmatpush1.msra.mxu0 %v233
    %470 = vmatprep.subr.mxu0 0.0
    %471 = vmatpush1.msra.mxu0 0.0
    %472 = vmatprep.subr.mxu0 0.0
    %473 = vmatpush1.msra.mxu0 0.0
    %474 = vmatprep.subr.mxu0 0.0
    %475 = vmatpush1.msra.mxu0 0.0
    %476 = vmatprep.subr.mxu0 0.0
    %477 = vmatpush1.msra.mxu0 0.0
    %478 = vmatprep.subr.mxu0 0.0
    %479 = vmatpush1.msra.mxu0 0.0
    %480 = vmatprep.subr.mxu0 0.0
    %481 = vmatpush1.msra.mxu0 0.0
    %482 = vmatprep.subr.mxu0 0.0
    %483 = vmatpush1.msra.mxu0 0.0
    %484 = vmatprep.subr.mxu0 0.0
    %485 = vmatpush1.msra.mxu0 0.0
    %486 = vmatprep.subr.mxu0 0.0
    %487 = vmatpush1.msra.mxu0 0.0
    %488 = vmatprep.subr.mxu0 0.0
    %489 = vmatpush1.msra.mxu0 0.0
    %490 = vmatprep.subr.mxu0 0.0
    %491 = vmatpush1.msra.mxu0 0.0
    %492 = vmatprep.subr.mxu0 0.0
    %493 = vmatpush1.msra.mxu0 0.0
    %494 = vmatprep.subr.mxu0 0.0
    %495 = vmatpush1.msra.mxu0 0.0
    %496 = vmatprep.subr.mxu0 0.0
    %497 = vmatpush1.msra.mxu0 0.0
    %498 = vmatprep.subr.mxu0 0.0
    %499 = vmatpush1.msra.mxu0 0.0
    %500 = vmatprep.subr.mxu0 0.0
    %501 = vmatpush1.msra.mxu0 0.0
    %502 = vmatprep.mubr.f32.mxu0 0.0
    %503 = vmatmul.mubr.f32.gmra.mrb[0].mxu0 %v326
    %v504 = vpop.f32.mrb[0].mxu0
    %v505 = vadd.f32 0.0, %v504
    %v506 = vpop.f32.mrb[0].mxu0
    %507 = vdwg.mxu0
    %v508 = vadd.f32 %v437, %v505
    %v509 = vtanh.pop %v508
    %510 = vmatprep.subr.mxu0 0.0
    %511 = vmatpush1.msra.mxu0 %v234
    %512 = vmatprep.subr.mxu0 0.0
    %513 = vmatpush1.msra.mxu0 %v235
    %514 = vmatprep.subr.mxu0 0.0
    %515 = vmatpush1.msra.mxu0 %v236
    %516 = vmatprep.subr.mxu0 0.0
    %517 = vmatpush1.msra.mxu0 %v237
    %518 = vmatprep.subr.mxu0 0.0
    %519 = vmatpush1.msra.mxu0 %v238
    %520 = vmatprep.subr.mxu0 0.0
    %521 = vmatpush1.msra.mxu0 %v239
    %522 = vmatprep.subr.mxu0 0.0
    %523 = vmatpush1.msra.mxu0 %v240
    %524 = vmatprep.subr.mxu0 0.0
    %525 = vmatpush1.msra.mxu0 %v241
    %526 = vmatprep.subr.mxu0 0.0
    %527 = vmatpush1.msra.mxu0 %v242
    %528 = vmatprep.subr.mxu0 0.0
    %529 = vmatpush1.msra.mxu0 %v243
    %530 = vmatprep.subr.mxu0 0.0
    %531 = vmatpush1.msra.mxu0 %v244
    %532 = vmatprep.subr.mxu0 0.0
    %533 = vmatpush1.msra.mxu0 %v245
    %534 = vmatprep.subr.mxu0 0.0
    %535 = vmatpush1.msra.mxu0 %v246
    %536 = vmatprep.subr.mxu0 0.0
    %537 = vmatpush1.msra.mxu0 %v247
    %538 = vmatprep.subr.mxu0 0.0
    %539 = vmatpush1.msra.mxu0 %v248
    %540 = vmatprep.subr.mxu0 0.0
    %541 = vmatpush1.msra.mxu0 %v249
    %542 = vmatprep.subr.mxu0 0.0
    %543 = vmatpush1.msra.mxu0 0.0
    %544 = vmatprep.subr.mxu0 0.0
    %545 = vmatpush1.msra.mxu0 0.0
    %546 = vmatprep.subr.mxu0 0.0
    %547 = vmatpush1.msra.mxu0 0.0
    %548 = vmatprep.subr.mxu0 0.0
    %549 = vmatpush1.msra.mxu0 0.0
    %550 = vmatprep.subr.mxu0 0.0
    %551 = vmatpush1.msra.mxu0 0.0
    %552 = vmatprep.subr.mxu0 0.0
    %553 = vmatpush1.msra.mxu0 0.0
    %554 = vmatprep.subr.mxu0 0.0
    %555 = vmatpush1.msra.mxu0 0.0
    %556 = vmatprep.subr.mxu0 0.0
    %557 = vmatpush1.msra.mxu0 0.0
    %558 = vmatprep.subr.mxu0 0.0
    %559 = vmatpush1.msra.mxu0 0.0
    %560 = vmatprep.subr.mxu0 0.0
    %561 = vmatpush1.msra.mxu0 0.0
    %562 = vmatprep.subr.mxu0 0.0
    %563 = vmatpush1.msra.mxu0 0.0
    %564 = vmatprep.subr.mxu0 0.0
    %565 = vmatpush1.msra.mxu0 0.0
    %566 = vmatprep.subr.mxu0 0.0
    %567 = vmatpush1.msra.mxu0 0.0
    %568 = vmatprep.subr.mxu0 0.0
    %569 = vmatpush1.msra.mxu0 0.0
    %570 = vmatprep.subr.mxu0 0.0
    %571 = vmatpush1.msra.mxu0 0.0
    %572 = vmatprep.subr.mxu0 0.0
    %573 = vmatpush1.msra.mxu0 0.0
    %574 = vmatprep.mubr.f32.mxu0 0.0
    %575 = vmatmul.mubr.f32.gmra.mrb[0].mxu0 %v509
    %v576 = vpop.f32.mrb[0].mxu0
    %v577 = vadd.f32 %v331, %v576
    %v578 = vpop.f32.mrb[0].mxu0
    %579 = vdwg.mxu0
    %580 = vmax.xlane.f32.xlu0 %v577
    %v581 = vpop.xlane.xlu0 %580
    %v582 = vsub.f32 %v577, %v581
    %v583 = vmul.f32 %v582, 1.442695
    %v584 = vpow.pop %v583
    %585 = vadd.xlane.f32.xlu0 %v584
    %v586 = vpop.xlane.xlu0 %585
    %v587 = vlog2.pop %v586
    %v588 = vmul.f32 %v587, 0.6931472
    %v589 = vadd.f32 %v588, %v581
    %s590 = scalar_lea.vmem %s7, 8
    %v591 = vld [vmem:[%s590] sm:$0xff]
    %592 = vset.pattern.permute.xlu0 0
    %593 = vperm.xlu0 %592, %v591
    %v594 = vpop.permute.xlu0 %593
    %vm595 = vcmp.eq.s32.totalorder %v252, %v594
    %v596 = vsel %vm595, %v577, 0.0
    %597 = vadd.xlane.f32.xlu0 %v596
    %v598 = vpop.xlane.xlu0 %597
    %s599 = scalar_lea.vmem %s8, 8
    %v600 = vld [vmem:[%s599] sm:$0xff]
    %v601 = vsub.f32 %v589, %v598
    %v602 = vmul.f32 %v600, %v601
    %v603 = vsel %vm424, %v602, 0.0
    %604 = vadd.xlane.f32.xlu0 %v603
    %v605 = vpop.xlane.xlu0 %604
    %v606 = vrot.slane %v605, 4
    %v607 = vadd.f32 %v605, %v606
    %v608 = vrot.slane %v607, 2
    %v609 = vadd.f32 %v607, %v608
    %v610 = vrot.slane %v609, 1
    %v611 = vadd.f32 %v609, %v610
    %s612 = vtos %v611
    %s613 = sadd.f32 %s435, %s612
    %s614 = scalar_lea.vmem [#allocation2], 16
    %v615 = vld [vmem:[%s614] sm:$0xff]
    %616 = vmatprep.subr.mxu0 0.0
    %617 = vmatpush1.msra.mxu0 %v218
    %618 = vmatprep.subr.mxu0 0.0
    %619 = vmatpush1.msra.mxu0 %v219
    %620 = vmatprep.subr.mxu0 0.0
    %621 = vmatpush1.msra.mxu0 %v220
    %622 = vmatprep.subr.mxu0 0.0
    %623 = vmatpush1.msra.mxu0 %v221
    %624 = vmatprep.subr.mxu0 0.0
    %625 = vmatpush1.msra.mxu0 %v222
    %626 = vmatprep.subr.mxu0 0.0
    %627 = vmatpush1.msra.mxu0 %v223
    %628 = vmatprep.subr.mxu0 0.0
    %629 = vmatpush1.msra.mxu0 %v224
    %630 = vmatprep.subr.mxu0 0.0
    %631 = vmatpush1.msra.mxu0 %v225
    %632 = vmatprep.subr.mxu0 0.0
    %633 = vmatpush1.msra.mxu0 %v226
    %634 = vmatprep.subr.mxu0 0.0
    %635 = vmatpush1.msra.mxu0 %v227
    %636 = vmatprep.subr.mxu0 0.0
    %637 = vmatpush1.msra.mxu0 %v228
    %638 = vmatprep.subr.mxu0 0.0
    %639 = vmatpush1.msra.mxu0 %v229
    %640 = vmatprep.subr.mxu0 0.0
    %641 = vmatpush1.msra.mxu0 %v230
    %642 = vmatprep.subr.mxu0 0.0
    %643 = vmatpush1.msra.mxu0 %v231
    %644 = vmatprep.subr.mxu0 0.0
    %645 = vmatpush1.msra.mxu0 %v232
    %646 = vmatprep.subr.mxu0 0.0
    %647 = vmatpush1.msra.mxu0 %v233
    %648 = vmatprep.subr.mxu0 0.0
    %649 = vmatpush1.msra.mxu0 0.0
    %650 = vmatprep.subr.mxu0 0.0
    %651 = vmatpush1.msra.mxu0 0.0
    %652 = vmatprep.subr.mxu0 0.0
    %653 = vmatpush1.msra.mxu0 0.0
    %654 = vmatprep.subr.mxu0 0.0
    %655 = vmatpush1.msra.mxu0 0.0
    %656 = vmatprep.subr.mxu0 0.0
    %657 = vmatpush1.msra.mxu0 0.0
    %658 = vmatprep.subr.mxu0 0.0
    %659 = vmatpush1.msra.mxu0 0.0
    %660 = vmatprep.subr.mxu0 0.0
    %661 = vmatpush1.msra.mxu0 0.0
    %662 = vmatprep.subr.mxu0 0.0
    %663 = vmatpush1.msra.mxu0 0.0
    %664 = vmatprep.subr.mxu0 0.0
    %665 = vmatpush1.msra.mxu0 0.0
    %666 = vmatprep.subr.mxu0 0.0
    %667 = vmatpush1.msra.mxu0 0.0
    %668 = vmatprep.subr.mxu0 0.0
    %669 = vmatpush1.msra.mxu0 0.0
    %670 = vmatprep.subr.mxu0 0.0
    %671 = vmatpush1.msra.mxu0 0.0
    %672 = vmatprep.subr.mxu0 0.0
    %673 = vmatpush1.msra.mxu0 0.0
    %674 = vmatprep.subr.mxu0 0.0
    %675 = vmatpush1.msra.mxu0 0.0
    %676 = vmatprep.subr.mxu0 0.0
    %677 = vmatpush1.msra.mxu0 0.0
    %678 = vmatprep.subr.mxu0 0.0
    %679 = vmatpush1.msra.mxu0 0.0
    %680 = vmatprep.mubr.f32.mxu0 0.0
    %681 = vmatmul.mubr.f32.gmra.mrb[0].mxu0 %v509
    %v682 = vpop.f32.mrb[0].mxu0
    %v683 = vadd.f32 0.0, %v682
    %v684 = vpop.f32.mrb[0].mxu0
    %685 = vdwg.mxu0
    %v686 = vadd.f32 %v615, %v683
    %v687 = vtanh.pop %v686
    %688 = vmatprep.subr.mxu0 0.0
    %689 = vmatpush1.msra.mxu0 %v234
    %690 = vmatprep.subr.mxu0 0.0
    %691 = vmatpush1.msra.mxu0 %v235
    %692 = vmatprep.subr.mxu0 0.0
    %693 = vmatpush1.msra.mxu0 %v236
    %694 = vmatprep.subr.mxu0 0.0
    %695 = vmatpush1.msra.mxu0 %v237
    %696 = vmatprep.subr.mxu0 0.0
    %697 = vmatpush1.msra.mxu0 %v238
    %698 = vmatprep.subr.mxu0 0.0
    %699 = vmatpush1.msra.mxu0 %v239
    %700 = vmatprep.subr.mxu0 0.0
    %701 = vmatpush1.msra.mxu0 %v240
    %702 = vmatprep.subr.mxu0 0.0
    %703 = vmatpush1.msra.mxu0 %v241
    %704 = vmatprep.subr.mxu0 0.0
    %705 = vmatpush1.msra.mxu0 %v242
    %706 = vmatprep.subr.mxu0 0.0
    %707 = vmatpush1.msra.mxu0 %v243
    %708 = vmatprep.subr.mxu0 0.0
    %709 = vmatpush1.msra.mxu0 %v244
    %710 = vmatprep.subr.mxu0 0.0
    %711 = vmatpush1.msra.mxu0 %v245
    %712 = vmatprep.subr.mxu0 0.0
    %713 = vmatpush1.msra.mxu0 %v246
    %714 = vmatprep.subr.mxu0 0.0
    %715 = vmatpush1.msra.mxu0 %v247
    %716 = vmatprep.subr.mxu0 0.0
    %717 = vmatpush1.msra.mxu0 %v248
    %718 = vmatprep.subr.mxu0 0.0
    %719 = vmatpush1.msra.mxu0 %v249
    %720 = vmatprep.subr.mxu0 0.0
    %721 = vmatpush1.msra.mxu0 0.0
    %722 = vmatprep.subr.mxu0 0.0
    %723 = vmatpush1.msra.mxu0 0.0
    %724 = vmatprep.subr.mxu0 0.0
    %725 = vmatpush1.msra.mxu0 0.0
    %726 = vmatprep.subr.mxu0 0.0
    %727 = vmatpush1.msra.mxu0 0.0
    %728 = vmatprep.subr.mxu0 0.0
    %729 = vmatpush1.msra.mxu0 0.0
    %730 = vmatprep.subr.mxu0 0.0
    %731 = vmatpush1.msra.mxu0 0.0
    %732 = vmatprep.subr.mxu0 0.0
    %733 = vmatpush1.msra.mxu0 0.0
    %734 = vmatprep.subr.mxu0 0.0
    %735 = vmatpush1.msra.mxu0 0.0
    %736 = vmatprep.subr.mxu0 0.0
    %737 = vmatpush1.msra.mxu0 0.0
    %738 = vmatprep.subr.mxu0 0.0
    %739 = vmatpush1.msra.mxu0 0.0
    %740 = vmatprep.subr.mxu0 0.0
    %741 = vmatpush1.msra.mxu0 0.0
    %742 = vmatprep.subr.mxu0 0.0
    %743 = vmatpush1.msra.mxu0 0.0
    %744 = vmatprep.subr.mxu0 0.0
    %745 = vmatpush1.msra.mxu0 0.0
    %746 = vmatprep.subr.mxu0 0.0
    %747 = vmatpush1.msra.mxu0 0.0
    %748 = vmatprep.subr.mxu0 0.0
    %749 = vmatpush1.msra.mxu0 0.0
    %750 = vmatprep.subr.mxu0 0.0
    %751 = vmatpush1.msra.mxu0 0.0
    %752 = vmatprep.mubr.f32.mxu0 0.0
    %753 = vmatmul.mubr.f32.gmra.mrb[0].mxu0 %v687
    %v754 = vpop.f32.mrb[0].mxu0
    %v755 = vadd.f32 %v331, %v754
    %v756 = vpop.f32.mrb[0].mxu0
    %757 = vdwg.mxu0
    %758 = vmax.xlane.f32.xlu0 %v755
    %v759 = vpop.xlane.xlu0 %758
    %v760 = vsub.f32 %v755, %v759
    %v761 = vmul.f32 %v760, 1.442695
    %v762 = vpow.pop %v761
    %763 = vadd.xlane.f32.xlu0 %v762
    %v764 = vpop.xlane.xlu0 %763
    %v765 = vlog2.pop %v764
    %v766 = vmul.f32 %v765, 0.6931472
    %v767 = vadd.f32 %v766, %v759
    %s768 = scalar_lea.vmem %s7, 16
    %v769 = vld [vmem:[%s768] sm:$0xff]
    %770 = vset.pattern.permute.xlu0 0
    %771 = vperm.xlu0 %770, %v769
    %v772 = vpop.permute.xlu0 %771
    %vm773 = vcmp.eq.s32.totalorder %v252, %v772
    %v774 = vsel %vm773, %v755, 0.0
    %775 = vadd.xlane.f32.xlu0 %v774
    %v776 = vpop.xlane.xlu0 %775
    %s777 = scalar_lea.vmem %s8, 16
    %v778 = vld [vmem:[%s777] sm:$0xff]
    %v779 = vsub.f32 %v767, %v776
    %v780 = vmul.f32 %v778, %v779
    %v781 = vsel %vm424, %v780, 0.0
    %782 = vadd.xlane.f32.xlu0 %v781
    %v783 = vpop.xlane.xlu0 %782
    %v784 = vrot.slane %v783, 4
    %v785 = vadd.f32 %v783, %v784
    %v786 = vrot.slane %v785, 2
    %v787 = vadd.f32 %v785, %v786
    %v788 = vrot.slane %v787, 1
    %v789 = vadd.f32 %v787, %v788
    %s790 = vtos %v789
    %s791 = sadd.f32 %s613, %s790
    %s792 = scalar_lea.vmem [#allocation2], 24
    %v793 = vld [vmem:[%s792] sm:$0xff]
    %794 = vmatprep.subr.mxu0 0.0
    %795 = vmatpush1.msra.mxu0 %v218
    %796 = vmatprep.subr.mxu0 0.0
    %797 = vmatpush1.msra.mxu0 %v219
    %798 = vmatprep.subr.mxu0 0.0
    %799 = vmatpush1.msra.mxu0 %v220
    %800 = vmatprep.subr.mxu0 0.0
    %801 = vmatpush1.msra.mxu0 %v221
    %802 = vmatprep.subr.mxu0 0.0
    %803 = vmatpush1.msra.mxu0 %v222
    %804 = vmatprep.subr.mxu0 0.0
    %805 = vmatpush1.msra.mxu0 %v223
    %806 = vmatprep.subr.mxu0 0.0
    %807 = vmatpush1.msra.mxu0 %v224
    %808 = vmatprep.subr.mxu0 0.0
    %809 = vmatpush1.msra.mxu0 %v225
    %810 = vmatprep.subr.mxu0 0.0
    %811 = vmatpush1.msra.mxu0 %v226
    %812 = vmatprep.subr.mxu0 0.0
    %813 = vmatpush1.msra.mxu0 %v227
    %814 = vmatprep.subr.mxu0 0.0
    %815 = vmatpush1.msra.mxu0 %v228
    %816 = vmatprep.subr.mxu0 0.0
    %817 = vmatpush1.msra.mxu0 %v229
    %818 = vmatprep.subr.mxu0 0.0
    %819 = vmatpush1.msra.mxu0 %v230
    %820 = vmatprep.subr.mxu0 0.0
    %821 = vmatpush1.msra.mxu0 %v231
    %822 = vmatprep.subr.mxu0 0.0
    %823 = vmatpush1.msra.mxu0 %v232
    %824 = vmatprep.subr.mxu0 0.0
    %825 = vmatpush1.msra.mxu0 %v233
    %826 = vmatprep.subr.mxu0 0.0
    %827 = vmatpush1.msra.mxu0 0.0
    %828 = vmatprep.subr.mxu0 0.0
    %829 = vmatpush1.msra.mxu0 0.0
    %830 = vmatprep.subr.mxu0 0.0
    %831 = vmatpush1.msra.mxu0 0.0
    %832 = vmatprep.subr.mxu0 0.0
    %833 = vmatpush1.msra.mxu0 0.0
    %834 = vmatprep.subr.mxu0 0.0
    %835 = vmatpush1.msra.mxu0 0.0
    %836 = vmatprep.subr.mxu0 0.0
    %837 = vmatpush1.msra.mxu0 0.0
    %838 = vmatprep.subr.mxu0 0.0
    %839 = vmatpush1.msra.mxu0 0.0
    %840 = vmatprep.subr.mxu0 0.0
    %841 = vmatpush1.msra.mxu0 0.0
    %842 = vmatprep.subr.mxu0 0.0
    %843 = vmatpush1.msra.mxu0 0.0
    %844 = vmatprep.subr.mxu0 0.0
    %845 = vmatpush1.msra.mxu0 0.0
    %846 = vmatprep.subr.mxu0 0.0
    %847 = vmatpush1.msra.mxu0 0.0
    %848 = vmatprep.subr.mxu0 0.0
    %849 = vmatpush1.msra.mxu0 0.0
    %850 = vmatprep.subr.mxu0 0.0
    %851 = vmatpush1.msra.mxu0 0.0
    %852 = vmatprep.subr.mxu0 0.0
    %853 = vmatpush1.msra.mxu0 0.0
    %854 = vmatprep.subr.mxu0 0.0
    %855 = vmatpush1.msra.mxu0 0.0
    %856 = vmatprep.subr.mxu0 0.0
    %857 = vmatpush1.msra.mxu0 0.0
    %858 = vmatprep.mubr.f32.mxu0 0.0
    %859 = vmatmul.mubr.f32.gmra.mrb[0].mxu0 %v687
    %v860 = vpop.f32.mrb[0].mxu0
    %v861 = vadd.f32 0.0, %v860
    %v862 = vpop.f32.mrb[0].mxu0
    %863 = vdwg.mxu0
    %v864 = vadd.f32 %v793, %v861
    %v865 = vtanh.pop %v864
    %866 = vmatprep.subr.mxu0 0.0
    %867 = vmatpush1.msra.mxu0 %v234
    %868 = vmatprep.subr.mxu0 0.0
    %869 = vmatpush1.msra.mxu0 %v235
    %870 = vmatprep.subr.mxu0 0.0
    %871 = vmatpush1.msra.mxu0 %v236
    %872 = vmatprep.subr.mxu0 0.0
    %873 = vmatpush1.msra.mxu0 %v237
    %874 = vmatprep.subr.mxu0 0.0
    %875 = vmatpush1.msra.mxu0 %v238
    %876 = vmatprep.subr.mxu0 0.0
    %877 = vmatpush1.msra.mxu0 %v239
    %878 = vmatprep.subr.mxu0 0.0
    %879 = vmatpush1.msra.mxu0 %v240
    %880 = vmatprep.subr.mxu0 0.0
    %881 = vmatpush1.msra.mxu0 %v241
    %882 = vmatprep.subr.mxu0 0.0
    %883 = vmatpush1.msra.mxu0 %v242
    %884 = vmatprep.subr.mxu0 0.0
    %885 = vmatpush1.msra.mxu0 %v243
    %886 = vmatprep.subr.mxu0 0.0
    %887 = vmatpush1.msra.mxu0 %v244
    %888 = vmatprep.subr.mxu0 0.0
    %889 = vmatpush1.msra.mxu0 %v245
    %890 = vmatprep.subr.mxu0 0.0
    %891 = vmatpush1.msra.mxu0 %v246
    %892 = vmatprep.subr.mxu0 0.0
    %893 = vmatpush1.msra.mxu0 %v247
    %894 = vmatprep.subr.mxu0 0.0
    %895 = vmatpush1.msra.mxu0 %v248
    %896 = vmatprep.subr.mxu0 0.0
    %897 = vmatpush1.msra.mxu0 %v249
    %898 = vmatprep.subr.mxu0 0.0
    %899 = vmatpush1.msra.mxu0 0.0
    %900 = vmatprep.subr.mxu0 0.0
    %901 = vmatpush1.msra.mxu0 0.0
    %902 = vmatprep.subr.mxu0 0.0
    %903 = vmatpush1.msra.mxu0 0.0
    %904 = vmatprep.subr.mxu0 0.0
    %905 = vmatpush1.msra.mxu0 0.0
    %906 = vmatprep.subr.mxu0 0.0
    %907 = vmatpush1.msra.mxu0 0.0
    %908 = vmatprep.subr.mxu0 0.0
    %909 = vmatpush1.msra.mxu0 0.0
    %910 = vmatprep.subr.mxu0 0.0
    %911 = vmatpush1.msra.mxu0 0.0
    %912 = vmatprep.subr.mxu0 0.0
    %913 = vmatpush1.msra.mxu0 0.0
    %914 = vmatprep.subr.mxu0 0.0
    %915 = vmatpush1.msra.mxu0 0.0
    %916 = vmatprep.subr.mxu0 0.0
    %917 = vmatpush1.msra.mxu0 0.0
    %918 = vmatprep.subr.mxu0 0.0
    %919 = vmatpush1.msra.mxu0 0.0
    %920 = vmatprep.subr.mxu0 0.0
    %921 = vmatpush1.msra.mxu0 0.0
    %922 = vmatprep.subr.mxu0 0.0
    %923 = vmatpush1.msra.mxu0 0.0
    %924 = vmatprep.subr.mxu0 0.0
    %925 = vmatpush1.msra.mxu0 0.0
    %926 = vmatprep.subr.mxu0 0.0
    %927 = vmatpush1.msra.mxu0 0.0
    %928 = vmatprep.subr.mxu0 0.0
    %929 = vmatpush1.msra.mxu0 0.0
    %930 = vmatprep.mubr.f32.mxu0 0.0
    %931 = vmatmul.mubr.f32.gmra.mrb[0].mxu0 %v865
    %v932 = vpop.f32.mrb[0].mxu0
    %v933 = vadd.f32 %v331, %v932
    %v934 = vpop.f32.mrb[0].mxu0
    %935 = vdwg.mxu0
    %936 = vmax.xlane.f32.xlu0 %v933
    %v937 = vpop.xlane.xlu0 %936
    %v938 = vsub.f32 %v933, %v937
    %v939 = vmul.f32 %v938, 1.442695
    %v940 = vpow.pop %v939
    %941 = vadd.xlane.f32.xlu0 %v940
    %v942 = vpop.xlane.xlu0 %941
    %v943 = vlog2.pop %v942
    %v944 = vmul.f32 %v943, 0.6931472
    %v945 = vadd.f32 %v944, %v937
    %s946 = scalar_lea.vmem %s7, 24
    %v947 = vld [vmem:[%s946] sm:$0xff]
    %948 = vset.pattern.permute.xlu0 0
    %949 = vperm.xlu0 %948, %v947
    %v950 = vpop.permute.xlu0 %949
    %vm951 = vcmp.eq.s32.totalorder %v252, %v950
    %v952 = vsel %vm951, %v933, 0.0
    %953 = vadd.xlane.f32.xlu0 %v952
    %v954 = vpop.xlane.xlu0 %953
    %s955 = scalar_lea.vmem %s8, 24
    %v956 = vld [vmem:[%s955] sm:$0xff]
    %v957 = vsub.f32 %v945, %v954
    %v958 = vmul.f32 %v956, %v957
    %v959 = vsel %vm424, %v958, 0.0
    %960 = vadd.xlane.f32.xlu0 %v959
    %v961 = vpop.xlane.xlu0 %960
    %v962 = vrot.slane %v961, 4
    %v963 = vadd.f32 %v961, %v962
    %v964 = vrot.slane %v963, 2
    %v965 = vadd.f32 %v963, %v964
    %v966 = vrot.slane %v965, 1
    %v967 = vadd.f32 %v965, %v966
    %s968 = vtos %v967
    %s969 = sadd.f32 %s791, %s968
    %s970 = scalar_lea.vmem [#allocation2], 32
    %v971 = vld [vmem:[%s970] sm:$0xff]
    %972 = vmatprep.subr.mxu0 0.0
    %973 = vmatpush1.msra.mxu0 %v218
    %974 = vmatprep.subr.mxu0 0.0
    %975 = vmatpush1.msra.mxu0 %v219
    %976 = vmatprep.subr.mxu0 0.0
    %977 = vmatpush1.msra.mxu0 %v220
    %978 = vmatprep.subr.mxu0 0.0
    %979 = vmatpush1.msra.mxu0 %v221
    %980 = vmatprep.subr.mxu0 0.0
    %981 = vmatpush1.msra.mxu0 %v222
    %982 = vmatprep.subr.mxu0 0.0
    %983 = vmatpush1.msra.mxu0 %v223
    %984 = vmatprep.subr.mxu0 0.0
    %985 = vmatpush1.msra.mxu0 %v224
    %986 = vmatprep.subr.mxu0 0.0
    %987 = vmatpush1.msra.mxu0 %v225
    %988 = vmatprep.subr.mxu0 0.0
    %989 = vmatpush1.msra.mxu0 %v226
    %990 = vmatprep.subr.mxu0 0.0
    %991 = vmatpush1.msra.mxu0 %v227
    %992 = vmatprep.subr.mxu0 0.0
    %993 = vmatpush1.msra.mxu0 %v228
    %994 = vmatprep.subr.mxu0 0.0
    %995 = vmatpush1.msra.mxu0 %v229
    %996 = vmatprep.subr.mxu0 0.0
    %997 = vmatpush1.msra.mxu0 %v230
    %998 = vmatprep.subr.mxu0 0.0
    %999 = vmatpush1.msra.mxu0 %v231
    %1000 = vmatprep.subr.mxu0 0.0
    %1001 = vmatpush1.msra.mxu0 %v232
    %1002 = vmatprep.subr.mxu0 0.0
    %1003 = vmatpush1.msra.mxu0 %v233
    %1004 = vmatprep.subr.mxu0 0.0
    %1005 = vmatpush1.msra.mxu0 0.0
    %1006 = vmatprep.subr.mxu0 0.0
    %1007 = vmatpush1.msra.mxu0 0.0
    %1008 = vmatprep.subr.mxu0 0.0
    %1009 = vmatpush1.msra.mxu0 0.0
    %1010 = vmatprep.subr.mxu0 0.0
    %1011 = vmatpush1.msra.mxu0 0.0
    %1012 = vmatprep.subr.mxu0 0.0
    %1013 = vmatpush1.msra.mxu0 0.0
    %1014 = vmatprep.subr.mxu0 0.0
    %1015 = vmatpush1.msra.mxu0 0.0
    %1016 = vmatprep.subr.mxu0 0.0
    %1017 = vmatpush1.msra.mxu0 0.0
    %1018 = vmatprep.subr.mxu0 0.0
    %1019 = vmatpush1.msra.mxu0 0.0
    %1020 = vmatprep.subr.mxu0 0.0
    %1021 = vmatpush1.msra.mxu0 0.0
    %1022 = vmatprep.subr.mxu0 0.0
    %1023 = vmatpush1.msra.mxu0 0.0
    %1024 = vmatprep.subr.mxu0 0.0
    %1025 = vmatpush1.msra.mxu0 0.0
    %1026 = vmatprep.subr.mxu0 0.0
    %1027 = vmatpush1.msra.mxu0 0.0
    %1028 = vmatprep.subr.mxu0 0.0
    %1029 = vmatpush1.msra.mxu0 0.0
    %1030 = vmatprep.subr.mxu0 0.0
    %1031 = vmatpush1.msra.mxu0 0.0
    %1032 = vmatprep.subr.mxu0 0.0
    %1033 = vmatpush1.msra.mxu0 0.0
    %1034 = vmatprep.subr.mxu0 0.0
    %1035 = vmatpush1.msra.mxu0 0.0
    %1036 = vmatprep.mubr.f32.mxu0 0.0
    %1037 = vmatmul.mubr.f32.gmra.mrb[0].mxu0 %v865
    %v1038 = vpop.f32.mrb[0].mxu0
    %v1039 = vadd.f32 0.0, %v1038
    %v1040 = vpop.f32.mrb[0].mxu0
    %1041 = vdwg.mxu0
    %v1042 = vadd.f32 %v971, %v1039
    %v1043 = vtanh.pop %v1042
    %1044 = vmatprep.subr.mxu0 0.0
    %1045 = vmatpush1.msra.mxu0 %v234
    %1046 = vmatprep.subr.mxu0 0.0
    %1047 = vmatpush1.msra.mxu0 %v235
    %1048 = vmatprep.subr.mxu0 0.0
    %1049 = vmatpush1.msra.mxu0 %v236
    %1050 = vmatprep.subr.mxu0 0.0
    %1051 = vmatpush1.msra.mxu0 %v237
    %1052 = vmatprep.subr.mxu0 0.0
    %1053 = vmatpush1.msra.mxu0 %v238
    %1054 = vmatprep.subr.mxu0 0.0
    %1055 = vmatpush1.msra.mxu0 %v239
    %1056 = vmatprep.subr.mxu0 0.0
    %1057 = vmatpush1.msra.mxu0 %v240
    %1058 = vmatprep.subr.mxu0 0.0
    %1059 = vmatpush1.msra.mxu0 %v241
    %1060 = vmatprep.subr.mxu0 0.0
    %1061 = vmatpush1.msra.mxu0 %v242
    %1062 = vmatprep.subr.mxu0 0.0
    %1063 = vmatpush1.msra.mxu0 %v243
    %1064 = vmatprep.subr.mxu0 0.0
    %1065 = vmatpush1.msra.mxu0 %v244
    %1066 = vmatprep.subr.mxu0 0.0
    %1067 = vmatpush1.msra.mxu0 %v245
    %1068 = vmatprep.subr.mxu0 0.0
    %1069 = vmatpush1.msra.mxu0 %v246
    %1070 = vmatprep.subr.mxu0 0.0
    %1071 = vmatpush1.msra.mxu0 %v247
    %1072 = vmatprep.subr.mxu0 0.0
    %1073 = vmatpush1.msra.mxu0 %v248
    %1074 = vmatprep.subr.mxu0 0.0
    %1075 = vmatpush1.msra.mxu0 %v249
    %1076 = vmatprep.subr.mxu0 0.0
    %1077 = vmatpush1.msra.mxu0 0.0
    %1078 = vmatprep.subr.mxu0 0.0
    %1079 = vmatpush1.msra.mxu0 0.0
    %1080 = vmatprep.subr.mxu0 0.0
    %1081 = vmatpush1.msra.mxu0 0.0
    %1082 = vmatprep.subr.mxu0 0.0
    %1083 = vmatpush1.msra.mxu0 0.0
    %1084 = vmatprep.subr.mxu0 0.0
    %1085 = vmatpush1.msra.mxu0 0.0
    %1086 = vmatprep.subr.mxu0 0.0
    %1087 = vmatpush1.msra.mxu0 0.0
    %1088 = vmatprep.subr.mxu0 0.0
    %1089 = vmatpush1.msra.mxu0 0.0
    %1090 = vmatprep.subr.mxu0 0.0
    %1091 = vmatpush1.msra.mxu0 0.0
    %1092 = vmatprep.subr.mxu0 0.0
    %1093 = vmatpush1.msra.mxu0 0.0
    %1094 = vmatprep.subr.mxu0 0.0
    %1095 = vmatpush1.msra.mxu0 0.0
    %1096 = vmatprep.subr.mxu0 0.0
    %1097 = vmatpush1.msra.mxu0 0.0
    %1098 = vmatprep.subr.mxu0 0.0
    %1099 = vmatpush1.msra.mxu0 0.0
    %1100 = vmatprep.subr.mxu0 0.0
    %1101 = vmatpush1.msra.mxu0 0.0
    %1102 = vmatprep.subr.mxu0 0.0
    %1103 = vmatpush1.msra.mxu0 0.0
    %1104 = vmatprep.subr.mxu0 0.0
    %1105 = vmatpush1.msra.mxu0 0.0
    %1106 = vmatprep.subr.mxu0 0.0
    %1107 = vmatpush1.msra.mxu0 0.0
    %1108 = vmatprep.mubr.f32.mxu0 0.0
    %1109 = vmatmul.mubr.f32.gmra.mrb[0].mxu0 %v1043
    %v1110 = vpop.f32.mrb[0].mxu0
    %v1111 = vadd.f32 %v331, %v1110
    %v1112 = vpop.f32.mrb[0].mxu0
    %1113 = vdwg.mxu0
    %1114 = vmax.xlane.f32.xlu0 %v1111
    %v1115 = vpop.xlane.xlu0 %1114
    %v1116 = vsub.f32 %v1111, %v1115
    %v1117 = vmul.f32 %v1116, 1.442695
    %v1118 = vpow.pop %v1117
    %1119 = vadd.xlane.f32.xlu0 %v1118
    %v1120 = vpop.xlane.xlu0 %1119
    %v1121 = vlog2.pop %v1120
    %v1122 = vmul.f32 %v1121, 0.6931472
    %v1123 = vadd.f32 %v1122, %v1115
    %s1124 = scalar_lea.vmem %s7, 32
    %v1125 = vld [vmem:[%s1124] sm:$0xff]
    %1126 = vset.pattern.permute.xlu0 0
    %1127 = vperm.xlu0 %1126, %v1125
    %v1128 = vpop.permute.xlu0 %1127
    %vm1129 = vcmp.eq.s32.totalorder %v252, %v1128
    %v1130 = vsel %vm1129, %v1111, 0.0
    %1131 = vadd.xlane.f32.xlu0 %v1130
    %v1132 = vpop.xlane.xlu0 %1131
    %s1133 = scalar_lea.vmem %s8, 32
    %v1134 = vld [vmem:[%s1133] sm:$0xff]
    %v1135 = vsub.f32 %v1123, %v1132
    %v1136 = vmul.f32 %v1134, %v1135
    %v1137 = vsel %vm424, %v1136, 0.0
    %1138 = vadd.xlane.f32.xlu0 %v1137
    %v1139 = vpop.xlane.xlu0 %1138
    %v1140 = vrot.slane %v1139, 4
    %v1141 = vadd.f32 %v1139, %v1140
    %v1142 = vrot.slane %v1141, 2
    %v1143 = vadd.f32 %v1141, %v1142
    %v1144 = vrot.slane %v1143, 1
    %v1145 = vadd.f32 %v1143, %v1144
    %s1146 = vtos %v1145
    %s1147 = sadd.f32 %s969, %s1146
    %s1148 = scalar_lea.vmem [#allocation2], 40
    %v1149 = vld [vmem:[%s1148] sm:$0xff]
    %1150 = vmatprep.subr.mxu0 0.0
    %1151 = vmatpush1.msra.mxu0 %v218
    %1152 = vmatprep.subr.mxu0 0.0
    %1153 = vmatpush1.msra.mxu0 %v219
    %1154 = vmatprep.subr.mxu0 0.0
    %1155 = vmatpush1.msra.mxu0 %v220
    %1156 = vmatprep.subr.mxu0 0.0
    %1157 = vmatpush1.msra.mxu0 %v221
    %1158 = vmatprep.subr.mxu0 0.0
    %1159 = vmatpush1.msra.mxu0 %v222
    %1160 = vmatprep.subr.mxu0 0.0
    %1161 = vmatpush1.msra.mxu0 %v223
    %1162 = vmatprep.subr.mxu0 0.0
    %1163 = vmatpush1.msra.mxu0 %v224
    %1164 = vmatprep.subr.mxu0 0.0
    %1165 = vmatpush1.msra.mxu0 %v225
    %1166 = vmatprep.subr.mxu0 0.0
    %1167 = vmatpush1.msra.mxu0 %v226
    %1168 = vmatprep.subr.mxu0 0.0
    %1169 = vmatpush1.msra.mxu0 %v227
    %1170 = vmatprep.subr.mxu0 0.0
    %1171 = vmatpush1.msra.mxu0 %v228
    %1172 = vmatprep.subr.mxu0 0.0
    %1173 = vmatpush1.msra.mxu0 %v229
    %1174 = vmatprep.subr.mxu0 0.0
    %1175 = vmatpush1.msra.mxu0 %v230
    %1176 = vmatprep.subr.mxu0 0.0
    %1177 = vmatpush1.msra.mxu0 %v231
    %1178 = vmatprep.subr.mxu0 0.0
    %1179 = vmatpush1.msra.mxu0 %v232
    %1180 = vmatprep.subr.mxu0 0.0
    %1181 = vmatpush1.msra.mxu0 %v233
    %1182 = vmatprep.subr.mxu0 0.0
    %1183 = vmatpush1.msra.mxu0 0.0
    %1184 = vmatprep.subr.mxu0 0.0
    %1185 = vmatpush1.msra.mxu0 0.0
    %1186 = vmatprep.subr.mxu0 0.0
    %1187 = vmatpush1.msra.mxu0 0.0
    %1188 = vmatprep.subr.mxu0 0.0
    %1189 = vmatpush1.msra.mxu0 0.0
    %1190 = vmatprep.subr.mxu0 0.0
    %1191 = vmatpush1.msra.mxu0 0.0
    %1192 = vmatprep.subr.mxu0 0.0
    %1193 = vmatpush1.msra.mxu0 0.0
    %1194 = vmatprep.subr.mxu0 0.0
    %1195 = vmatpush1.msra.mxu0 0.0
    %1196 = vmatprep.subr.mxu0 0.0
    %1197 = vmatpush1.msra.mxu0 0.0
    %1198 = vmatprep.subr.mxu0 0.0
    %1199 = vmatpush1.msra.mxu0 0.0
    %1200 = vmatprep.subr.mxu0 0.0
    %1201 = vmatpush1.msra.mxu0 0.0
    %1202 = vmatprep.subr.mxu0 0.0
    %1203 = vmatpush1.msra.mxu0 0.0
    %1204 = vmatprep.subr.mxu0 0.0
    %1205 = vmatpush1.msra.mxu0 0.0
    %1206 = vmatprep.subr.mxu0 0.0
    %1207 = vmatpush1.msra.mxu0 0.0
    %1208 = vmatprep.subr.mxu0 0.0
    %1209 = vmatpush1.msra.mxu0 0.0
    %1210 = vmatprep.subr.mxu0 0.0
    %1211 = vmatpush1.msra.mxu0 0.0
    %1212 = vmatprep.subr.mxu0 0.0
    %1213 = vmatpush1.msra.mxu0 0.0
    %1214 = vmatprep.mubr.f32.mxu0 0.0
    %1215 = vmatmul.mubr.f32.gmra.mrb[0].mxu0 %v1043
    %v1216 = vpop.f32.mrb[0].mxu0
    %v1217 = vadd.f32 0.0, %v1216
    %v1218 = vpop.f32.mrb[0].mxu0
    %1219 = vdwg.mxu0
    %v1220 = vadd.f32 %v1149, %v1217
    %v1221 = vtanh.pop %v1220
    %1222 = vmatprep.subr.mxu0 0.0
    %1223 = vmatpush1.msra.mxu0 %v234
    %1224 = vmatprep.subr.mxu0 0.0
    %1225 = vmatpush1.msra.mxu0 %v235
    %1226 = vmatprep.subr.mxu0 0.0
    %1227 = vmatpush1.msra.mxu0 %v236
    %1228 = vmatprep.subr.mxu0 0.0
    %1229 = vmatpush1.msra.mxu0 %v237
    %1230 = vmatprep.subr.mxu0 0.0
    %1231 = vmatpush1.msra.mxu0 %v238
    %1232 = vmatprep.subr.mxu0 0.0
    %1233 = vmatpush1.msra.mxu0 %v239
    %1234 = vmatprep.subr.mxu0 0.0
    %1235 = vmatpush1.msra.mxu0 %v240
    %1236 = vmatprep.subr.mxu0 0.0
    %1237 = vmatpush1.msra.mxu0 %v241
    %1238 = vmatprep.subr.mxu0 0.0
    %1239 = vmatpush1.msra.mxu0 %v242
    %1240 = vmatprep.subr.mxu0 0.0
    %1241 = vmatpush1.msra.mxu0 %v243
    %1242 = vmatprep.subr.mxu0 0.0
    %1243 = vmatpush1.msra.mxu0 %v244
    %1244 = vmatprep.subr.mxu0 0.0
    %1245 = vmatpush1.msra.mxu0 %v245
    %1246 = vmatprep.subr.mxu0 0.0
    %1247 = vmatpush1.msra.mxu0 %v246
    %1248 = vmatprep.subr.mxu0 0.0
    %1249 = vmatpush1.msra.mxu0 %v247
    %1250 = vmatprep.subr.mxu0 0.0
    %1251 = vmatpush1.msra.mxu0 %v248
    %1252 = vmatprep.subr.mxu0 0.0
    %1253 = vmatpush1.msra.mxu0 %v249
    %1254 = vmatprep.subr.mxu0 0.0
    %1255 = vmatpush1.msra.mxu0 0.0
    %1256 = vmatprep.subr.mxu0 0.0
    %1257 = vmatpush1.msra.mxu0 0.0
    %1258 = vmatprep.subr.mxu0 0.0
    %1259 = vmatpush1.msra.mxu0 0.0
    %1260 = vmatprep.subr.mxu0 0.0
    %1261 = vmatpush1.msra.mxu0 0.0
    %1262 = vmatprep.subr.mxu0 0.0
    %1263 = vmatpush1.msra.mxu0 0.0
    %1264 = vmatprep.subr.mxu0 0.0
    %1265 = vmatpush1.msra.mxu0 0.0
    %1266 = vmatprep.subr.mxu0 0.0
    %1267 = vmatpush1.msra.mxu0 0.0
    %1268 = vmatprep.subr.mxu0 0.0
    %1269 = vmatpush1.msra.mxu0 0.0
    %1270 = vmatprep.subr.mxu0 0.0
    %1271 = vmatpush1.msra.mxu0 0.0
    %1272 = vmatprep.subr.mxu0 0.0
    %1273 = vmatpush1.msra.mxu0 0.0
    %1274 = vmatprep.subr.mxu0 0.0
    %1275 = vmatpush1.msra.mxu0 0.0
    %1276 = vmatprep.subr.mxu0 0.0
    %1277 = vmatpush1.msra.mxu0 0.0
    %1278 = vmatprep.subr.mxu0 0.0
    %1279 = vmatpush1.msra.mxu0 0.0
    %1280 = vmatprep.subr.mxu0 0.0
    %1281 = vmatpush1.msra.mxu0 0.0
    %1282 = vmatprep.subr.mxu0 0.0
    %1283 = vmatpush1.msra.mxu0 0.0
    %1284 = vmatprep.subr.mxu0 0.0
    %1285 = vmatpush1.msra.mxu0 0.0
    %1286 = vmatprep.mubr.f32.mxu0 0.0
    %1287 = vmatmul.mubr.f32.gmra.mrb[0].mxu0 %v1221
    %v1288 = vpop.f32.mrb[0].mxu0
    %v1289 = vadd.f32 %v331, %v1288
    %v1290 = vpop.f32.mrb[0].mxu0
    %1291 = vdwg.mxu0
    %1292 = vmax.xlane.f32.xlu0 %v1289
    %v1293 = vpop.xlane.xlu0 %1292
    %v1294 = vsub.f32 %v1289, %v1293
    %v1295 = vmul.f32 %v1294, 1.442695
    %v1296 = vpow.pop %v1295
    %1297 = vadd.xlane.f32.xlu0 %v1296
    %v1298 = vpop.xlane.xlu0 %1297
    %v1299 = vlog2.pop %v1298
    %v1300 = vmul.f32 %v1299, 0.6931472
    %v1301 = vadd.f32 %v1300, %v1293
    %s1302 = scalar_lea.vmem %s7, 40
    %v1303 = vld [vmem:[%s1302] sm:$0xff]
    %1304 = vset.pattern.permute.xlu0 0
    %1305 = vperm.xlu0 %1304, %v1303
    %v1306 = vpop.permute.xlu0 %1305
    %vm1307 = vcmp.eq.s32.totalorder %v252, %v1306
    %v1308 = vsel %vm1307, %v1289, 0.0
    %1309 = vadd.xlane.f32.xlu0 %v1308
    %v1310 = vpop.xlane.xlu0 %1309
    %s1311 = scalar_lea.vmem %s8, 40
    %v1312 = vld [vmem:[%s1311] sm:$0xff]
    %v1313 = vsub.f32 %v1301, %v1310
    %v1314 = vmul.f32 %v1312, %v1313
    %v1315 = vsel %vm424, %v1314, 0.0
    %1316 = vadd.xlane.f32.xlu0 %v1315
    %v1317 = vpop.xlane.xlu0 %1316
    %v1318 = vrot.slane %v1317, 4
    %v1319 = vadd.f32 %v1317, %v1318
    %v1320 = vrot.slane %v1319, 2
    %v1321 = vadd.f32 %v1319, %v1320
    %v1322 = vrot.slane %v1321, 1
    %v1323 = vadd.f32 %v1321, %v1322
    %s1324 = vtos %v1323
    %s1325 = sadd.f32 %s1147, %s1324
    %s1326 = scalar_lea.vmem [#allocation2], 48
    %v1327 = vld [vmem:[%s1326] sm:$0xff]
    %1328 = vmatprep.subr.mxu0 0.0
    %1329 = vmatpush1.msra.mxu0 %v218
    %1330 = vmatprep.subr.mxu0 0.0
    %1331 = vmatpush1.msra.mxu0 %v219
    %1332 = vmatprep.subr.mxu0 0.0
    %1333 = vmatpush1.msra.mxu0 %v220
    %1334 = vmatprep.subr.mxu0 0.0
    %1335 = vmatpush1.msra.mxu0 %v221
    %1336 = vmatprep.subr.mxu0 0.0
    %1337 = vmatpush1.msra.mxu0 %v222
    %1338 = vmatprep.subr.mxu0 0.0
    %1339 = vmatpush1.msra.mxu0 %v223
    %1340 = vmatprep.subr.mxu0 0.0
    %1341 = vmatpush1.msra.mxu0 %v224
    %1342 = vmatprep.subr.mxu0 0.0
    %1343 = vmatpush1.msra.mxu0 %v225
    %1344 = vmatprep.subr.mxu0 0.0
    %1345 = vmatpush1.msra.mxu0 %v226
    %1346 = vmatprep.subr.mxu0 0.0
    %1347 = vmatpush1.msra.mxu0 %v227
    %1348 = vmatprep.subr.mxu0 0.0
    %1349 = vmatpush1.msra.mxu0 %v228
    %1350 = vmatprep.subr.mxu0 0.0
    %1351 = vmatpush1.msra.mxu0 %v229
    %1352 = vmatprep.subr.mxu0 0.0
    %1353 = vmatpush1.msra.mxu0 %v230
    %1354 = vmatprep.subr.mxu0 0.0
    %1355 = vmatpush1.msra.mxu0 %v231
    %1356 = vmatprep.subr.mxu0 0.0
    %1357 = vmatpush1.msra.mxu0 %v232
    %1358 = vmatprep.subr.mxu0 0.0
    %1359 = vmatpush1.msra.mxu0 %v233
    %1360 = vmatprep.subr.mxu0 0.0
    %1361 = vmatpush1.msra.mxu0 0.0
    %1362 = vmatprep.subr.mxu0 0.0
    %1363 = vmatpush1.msra.mxu0 0.0
    %1364 = vmatprep.subr.mxu0 0.0
    %1365 = vmatpush1.msra.mxu0 0.0
    %1366 = vmatprep.subr.mxu0 0.0
    %1367 = vmatpush1.msra.mxu0 0.0
    %1368 = vmatprep.subr.mxu0 0.0
    %1369 = vmatpush1.msra.mxu0 0.0
    %1370 = vmatprep.subr.mxu0 0.0
    %1371 = vmatpush1.msra.mxu0 0.0
    %1372 = vmatprep.subr.mxu0 0.0
    %1373 = vmatpush1.msra.mxu0 0.0
    %1374 = vmatprep.subr.mxu0 0.0
    %1375 = vmatpush1.msra.mxu0 0.0
    %1376 = vmatprep.subr.mxu0 0.0
    %1377 = vmatpush1.msra.mxu0 0.0
    %1378 = vmatprep.subr.mxu0 0.0
    %1379 = vmatpush1.msra.mxu0 0.0
    %1380 = vmatprep.subr.mxu0 0.0
    %1381 = vmatpush1.msra.mxu0 0.0
    %1382 = vmatprep.subr.mxu0 0.0
    %1383 = vmatpush1.msra.mxu0 0.0
    %1384 = vmatprep.subr.mxu0 0.0
    %1385 = vmatpush1.msra.mxu0 0.0
    %1386 = vmatprep.subr.mxu0 0.0
    %1387 = vmatpush1.msra.mxu0 0.0
    %1388 = vmatprep.subr.mxu0 0.0
    %1389 = vmatpush1.msra.mxu0 0.0
    %1390 = vmatprep.subr.mxu0 0.0
    %1391 = vmatpush1.msra.mxu0 0.0
    %1392 = vmatprep.mubr.f32.mxu0 0.0
    %1393 = vmatmul.mubr.f32.gmra.mrb[0].mxu0 %v1221
    %v1394 = vpop.f32.mrb[0].mxu0
    %v1395 = vadd.f32 0.0, %v1394
    %v1396 = vpop.f32.mrb[0].mxu0
    %1397 = vdwg.mxu0
    %v1398 = vadd.f32 %v1327, %v1395
    %v1399 = vtanh.pop %v1398
    %1400 = vmatprep.subr.mxu0 0.0
    %1401 = vmatpush1.msra.mxu0 %v234
    %1402 = vmatprep.subr.mxu0 0.0
    %1403 = vmatpush1.msra.mxu0 %v235
    %1404 = vmatprep.subr.mxu0 0.0
    %1405 = vmatpush1.msra.mxu0 %v236
    %1406 = vmatprep.subr.mxu0 0.0
    %1407 = vmatpush1.msra.mxu0 %v237
    %1408 = vmatprep.subr.mxu0 0.0
    %1409 = vmatpush1.msra.mxu0 %v238
    %1410 = vmatprep.subr.mxu0 0.0
    %1411 = vmatpush1.msra.mxu0 %v239
    %1412 = vmatprep.subr.mxu0 0.0
    %1413 = vmatpush1.msra.mxu0 %v240
    %1414 = vmatprep.subr.mxu0 0.0
    %1415 = vmatpush1.msra.mxu0 %v241
    %1416 = vmatprep.subr.mxu0 0.0
    %1417 = vmatpush1.msra.mxu0 %v242
    %1418 = vmatprep.subr.mxu0 0.0
    %1419 = vmatpush1.msra.mxu0 %v243
    %1420 = vmatprep.subr.mxu0 0.0
    %1421 = vmatpush1.msra.mxu0 %v244
    %1422 = vmatprep.subr.mxu0 0.0
    %1423 = vmatpush1.msra.mxu0 %v245
    %1424 = vmatprep.subr.mxu0 0.0
    %1425 = vmatpush1.msra.mxu0 %v246
    %1426 = vmatprep.subr.mxu0 0.0
    %1427 = vmatpush1.msra.mxu0 %v247
    %1428 = vmatprep.subr.mxu0 0.0
    %1429 = vmatpush1.msra.mxu0 %v248
    %1430 = vmatprep.subr.mxu0 0.0
    %1431 = vmatpush1.msra.mxu0 %v249
    %1432 = vmatprep.subr.mxu0 0.0
    %1433 = vmatpush1.msra.mxu0 0.0
    %1434 = vmatprep.subr.mxu0 0.0
    %1435 = vmatpush1.msra.mxu0 0.0
    %1436 = vmatprep.subr.mxu0 0.0
    %1437 = vmatpush1.msra.mxu0 0.0
    %1438 = vmatprep.subr.mxu0 0.0
    %1439 = vmatpush1.msra.mxu0 0.0
    %1440 = vmatprep.subr.mxu0 0.0
    %1441 = vmatpush1.msra.mxu0 0.0
    %1442 = vmatprep.subr.mxu0 0.0
    %1443 = vmatpush1.msra.mxu0 0.0
    %1444 = vmatprep.subr.mxu0 0.0
    %1445 = vmatpush1.msra.mxu0 0.0
    %1446 = vmatprep.subr.mxu0 0.0
    %1447 = vmatpush1.msra.mxu0 0.0
    %1448 = vmatprep.subr.mxu0 0.0
    %1449 = vmatpush1.msra.mxu0 0.0
    %1450 = vmatprep.subr.mxu0 0.0
    %1451 = vmatpush1.msra.mxu0 0.0
    %1452 = vmatprep.subr.mxu0 0.0
    %1453 = vmatpush1.msra.mxu0 0.0
    %1454 = vmatprep.subr.mxu0 0.0
    %1455 = vmatpush1.msra.mxu0 0.0
    %1456 = vmatprep.subr.mxu0 0.0
    %1457 = vmatpush1.msra.mxu0 0.0
    %1458 = vmatprep.subr.mxu0 0.0
    %1459 = vmatpush1.msra.mxu0 0.0
    %1460 = vmatprep.subr.mxu0 0.0
    %1461 = vmatpush1.msra.mxu0 0.0
    %1462 = vmatprep.subr.mxu0 0.0
    %1463 = vmatpush1.msra.mxu0 0.0
    %1464 = vmatprep.mubr.f32.mxu0 0.0
    %1465 = vmatmul.mubr.f32.gmra.mrb[0].mxu0 %v1399
    %v1466 = vpop.f32.mrb[0].mxu0
    %v1467 = vadd.f32 %v331, %v1466
    %v1468 = vpop.f32.mrb[0].mxu0
    %1469 = vdwg.mxu0
    %1470 = vmax.xlane.f32.xlu0 %v1467
    %v1471 = vpop.xlane.xlu0 %1470
    %v1472 = vsub.f32 %v1467, %v1471
    %v1473 = vmul.f32 %v1472, 1.442695
    %v1474 = vpow.pop %v1473
    %1475 = vadd.xlane.f32.xlu0 %v1474
    %v1476 = vpop.xlane.xlu0 %1475
    %v1477 = vlog2.pop %v1476
    %v1478 = vmul.f32 %v1477, 0.6931472
    %v1479 = vadd.f32 %v1478, %v1471
    %s1480 = scalar_lea.vmem %s7, 48
    %v1481 = vld [vmem:[%s1480] sm:$0xff]
    %1482 = vset.pattern.permute.xlu0 0
    %1483 = vperm.xlu0 %1482, %v1481
    %v1484 = vpop.permute.xlu0 %1483
    %vm1485 = vcmp.eq.s32.totalorder %v252, %v1484
    %v1486 = vsel %vm1485, %v1467, 0.0
    %1487 = vadd.xlane.f32.xlu0 %v1486
    %v1488 = vpop.xlane.xlu0 %1487
    %s1489 = scalar_lea.vmem %s8, 48
    %v1490 = vld [vmem:[%s1489] sm:$0xff]
    %v1491 = vsub.f32 %v1479, %v1488
    %v1492 = vmul.f32 %v1490, %v1491
    %v1493 = vsel %vm424, %v1492, 0.0
    %1494 = vadd.xlane.f32.xlu0 %v1493
    %v1495 = vpop.xlane.xlu0 %1494
    %v1496 = vrot.slane %v1495, 4
    %v1497 = vadd.f32 %v1495, %v1496
    %v1498 = vrot.slane %v1497, 2
    %v1499 = vadd.f32 %v1497, %v1498
    %v1500 = vrot.slane %v1499, 1
    %v1501 = vadd.f32 %v1499, %v1500
    %s1502 = vtos %v1501
    %s1503 = sadd.f32 %s1325, %s1502
    %s1504 = scalar_lea.vmem [#allocation2], 56
    %v1505 = vld [vmem:[%s1504] sm:$0xff]
    %1506 = vmatprep.subr.mxu0 0.0
    %1507 = vmatpush1.msra.mxu0 %v218
    %1508 = vmatprep.subr.mxu0 0.0
    %1509 = vmatpush1.msra.mxu0 %v219
    %1510 = vmatprep.subr.mxu0 0.0
    %1511 = vmatpush1.msra.mxu0 %v220
    %1512 = vmatprep.subr.mxu0 0.0
    %1513 = vmatpush1.msra.mxu0 %v221
    %1514 = vmatprep.subr.mxu0 0.0
    %1515 = vmatpush1.msra.mxu0 %v222
    %1516 = vmatprep.subr.mxu0 0.0
    %1517 = vmatpush1.msra.mxu0 %v223
    %1518 = vmatprep.subr.mxu0 0.0
    %1519 = vmatpush1.msra.mxu0 %v224
    %1520 = vmatprep.subr.mxu0 0.0
    %1521 = vmatpush1.msra.mxu0 %v225
    %1522 = vmatprep.subr.mxu0 0.0
    %1523 = vmatpush1.msra.mxu0 %v226
    %1524 = vmatprep.subr.mxu0 0.0
    %1525 = vmatpush1.msra.mxu0 %v227
    %1526 = vmatprep.subr.mxu0 0.0
    %1527 = vmatpush1.msra.mxu0 %v228
    %1528 = vmatprep.subr.mxu0 0.0
    %1529 = vmatpush1.msra.mxu0 %v229
    %1530 = vmatprep.subr.mxu0 0.0
    %1531 = vmatpush1.msra.mxu0 %v230
    %1532 = vmatprep.subr.mxu0 0.0
    %1533 = vmatpush1.msra.mxu0 %v231
    %1534 = vmatprep.subr.mxu0 0.0
    %1535 = vmatpush1.msra.mxu0 %v232
    %1536 = vmatprep.subr.mxu0 0.0
    %1537 = vmatpush1.msra.mxu0 %v233
    %1538 = vmatprep.subr.mxu0 0.0
    %1539 = vmatpush1.msra.mxu0 0.0
    %1540 = vmatprep.subr.mxu0 0.0
    %1541 = vmatpush1.msra.mxu0 0.0
    %1542 = vmatprep.subr.mxu0 0.0
    %1543 = vmatpush1.msra.mxu0 0.0
    %1544 = vmatprep.subr.mxu0 0.0
    %1545 = vmatpush1.msra.mxu0 0.0
    %1546 = vmatprep.subr.mxu0 0.0
    %1547 = vmatpush1.msra.mxu0 0.0
    %1548 = vmatprep.subr.mxu0 0.0
    %1549 = vmatpush1.msra.mxu0 0.0
    %1550 = vmatprep.subr.mxu0 0.0
    %1551 = vmatpush1.msra.mxu0 0.0
    %1552 = vmatprep.subr.mxu0 0.0
    %1553 = vmatpush1.msra.mxu0 0.0
    %1554 = vmatprep.subr.mxu0 0.0
    %1555 = vmatpush1.msra.mxu0 0.0
    %1556 = vmatprep.subr.mxu0 0.0
    %1557 = vmatpush1.msra.mxu0 0.0
    %1558 = vmatprep.subr.mxu0 0.0
    %1559 = vmatpush1.msra.mxu0 0.0
    %1560 = vmatprep.subr.mxu0 0.0
    %1561 = vmatpush1.msra.mxu0 0.0
    %1562 = vmatprep.subr.mxu0 0.0
    %1563 = vmatpush1.msra.mxu0 0.0
    %1564 = vmatprep.subr.mxu0 0.0
    %1565 = vmatpush1.msra.mxu0 0.0
    %1566 = vmatprep.subr.mxu0 0.0
    %1567 = vmatpush1.msra.mxu0 0.0
    %1568 = vmatprep.subr.mxu0 0.0
    %1569 = vmatpush1.msra.mxu0 0.0
    %1570 = vmatprep.mubr.f32.mxu0 0.0
    %1571 = vmatmul.mubr.f32.gmra.mrb[0].mxu0 %v1399
    %v1572 = vpop.f32.mrb[0].mxu0
    %v1573 = vadd.f32 0.0, %v1572
    %v1574 = vpop.f32.mrb[0].mxu0
    %1575 = vdwg.mxu0
    %v1576 = vadd.f32 %v1505, %v1573
    %v1577 = vtanh.pop %v1576
    %1578 = vmatprep.subr.mxu0 0.0
    %1579 = vmatpush1.msra.mxu0 %v234
    %1580 = vmatprep.subr.mxu0 0.0
    %1581 = vmatpush1.msra.mxu0 %v235
    %1582 = vmatprep.subr.mxu0 0.0
    %1583 = vmatpush1.msra.mxu0 %v236
    %1584 = vmatprep.subr.mxu0 0.0
    %1585 = vmatpush1.msra.mxu0 %v237
    %1586 = vmatprep.subr.mxu0 0.0
    %1587 = vmatpush1.msra.mxu0 %v238
    %1588 = vmatprep.subr.mxu0 0.0
    %1589 = vmatpush1.msra.mxu0 %v239
    %1590 = vmatprep.subr.mxu0 0.0
    %1591 = vmatpush1.msra.mxu0 %v240
    %1592 = vmatprep.subr.mxu0 0.0
    %1593 = vmatpush1.msra.mxu0 %v241
    %1594 = vmatprep.subr.mxu0 0.0
    %1595 = vmatpush1.msra.mxu0 %v242
    %1596 = vmatprep.subr.mxu0 0.0
    %1597 = vmatpush1.msra.mxu0 %v243
    %1598 = vmatprep.subr.mxu0 0.0
    %1599 = vmatpush1.msra.mxu0 %v244
    %1600 = vmatprep.subr.mxu0 0.0
    %1601 = vmatpush1.msra.mxu0 %v245
    %1602 = vmatprep.subr.mxu0 0.0
    %1603 = vmatpush1.msra.mxu0 %v246
    %1604 = vmatprep.subr.mxu0 0.0
    %1605 = vmatpush1.msra.mxu0 %v247
    %1606 = vmatprep.subr.mxu0 0.0
    %1607 = vmatpush1.msra.mxu0 %v248
    %1608 = vmatprep.subr.mxu0 0.0
    %1609 = vmatpush1.msra.mxu0 %v249
    %1610 = vmatprep.subr.mxu0 0.0
    %1611 = vmatpush1.msra.mxu0 0.0
    %1612 = vmatprep.subr.mxu0 0.0
    %1613 = vmatpush1.msra.mxu0 0.0
    %1614 = vmatprep.subr.mxu0 0.0
    %1615 = vmatpush1.msra.mxu0 0.0
    %1616 = vmatprep.subr.mxu0 0.0
    %1617 = vmatpush1.msra.mxu0 0.0
    %1618 = vmatprep.subr.mxu0 0.0
    %1619 = vmatpush1.msra.mxu0 0.0
    %1620 = vmatprep.subr.mxu0 0.0
    %1621 = vmatpush1.msra.mxu0 0.0
    %1622 = vmatprep.subr.mxu0 0.0
    %1623 = vmatpush1.msra.mxu0 0.0
    %1624 = vmatprep.subr.mxu0 0.0
    %1625 = vmatpush1.msra.mxu0 0.0
    %1626 = vmatprep.subr.mxu0 0.0
    %1627 = vmatpush1.msra.mxu0 0.0
    %1628 = vmatprep.subr.mxu0 0.0
    %1629 = vmatpush1.msra.mxu0 0.0
    %1630 = vmatprep.subr.mxu0 0.0
    %1631 = vmatpush1.msra.mxu0 0.0
    %1632 = vmatprep.subr.mxu0 0.0
    %1633 = vmatpush1.msra.mxu0 0.0
    %1634 = vmatprep.subr.mxu0 0.0
    %1635 = vmatpush1.msra.mxu0 0.0
    %1636 = vmatprep.subr.mxu0 0.0
    %1637 = vmatpush1.msra.mxu0 0.0
    %1638 = vmatprep.subr.mxu0 0.0
    %1639 = vmatpush1.msra.mxu0 0.0
    %1640 = vmatprep.subr.mxu0 0.0
    %1641 = vmatpush1.msra.mxu0 0.0
    %1642 = vmatprep.mubr.f32.mxu0 0.0
    %1643 = vmatmul.mubr.f32.gmra.mrb[0].mxu0 %v1577
    %v1644 = vpop.f32.mrb[0].mxu0
    %v1645 = vadd.f32 %v331, %v1644
    %v1646 = vpop.f32.mrb[0].mxu0
    %1647 = vdwg.mxu0
    %1648 = vmax.xlane.f32.xlu0 %v1645
    %v1649 = vpop.xlane.xlu0 %1648
    %v1650 = vsub.f32 %v1645, %v1649
    %v1651 = vmul.f32 %v1650, 1.442695
    %v1652 = vpow.pop %v1651
    %1653 = vadd.xlane.f32.xlu0 %v1652
    %v1654 = vpop.xlane.xlu0 %1653
    %v1655 = vlog2.pop %v1654
    %v1656 = vmul.f32 %v1655, 0.6931472
    %v1657 = vadd.f32 %v1656, %v1649
    %s1658 = scalar_lea.vmem %s7, 56
    %v1659 = vld [vmem:[%s1658] sm:$0xff]
    %1660 = vset.pattern.permute.xlu0 0
    %1661 = vperm.xlu0 %1660, %v1659
    %v1662 = vpop.permute.xlu0 %1661
    %vm1663 = vcmp.eq.s32.totalorder %v252, %v1662
    %v1664 = vsel %vm1663, %v1645, 0.0
    %1665 = vadd.xlane.f32.xlu0 %v1664
    %v1666 = vpop.xlane.xlu0 %1665
    %s1667 = scalar_lea.vmem %s8, 56
    %v1668 = vld [vmem:[%s1667] sm:$0xff]
    %v1669 = vsub.f32 %v1657, %v1666
    %v1670 = vmul.f32 %v1668, %v1669
    %v1671 = vsel %vm424, %v1670, 0.0
    %1672 = vadd.xlane.f32.xlu0 %v1671
    %v1673 = vpop.xlane.xlu0 %1672
    %v1674 = vrot.slane %v1673, 4
    %v1675 = vadd.f32 %v1673, %v1674
    %v1676 = vrot.slane %v1675, 2
    %v1677 = vadd.f32 %v1675, %v1676
    %v1678 = vrot.slane %v1677, 1
    %v1679 = vadd.f32 %v1677, %v1678
    %s1680 = vtos %v1679
    %s1681 = sadd.f32 %s1503, %s1680
    %s1682 = smul.f32 %s1681, 0.5
    %v1683 = vstv %s1682
    %1684 = vst [vmem:[#allocation9] sm:$0xff] %v1683
    // Predicated region
    $region50: #{tpu_custom_call.1} parent=1 // pred_check
      _
    $region51: #{tpu_custom_call.1} parent=1 // pred_check_branch
      %1686 = sbr.rel (0) target = $region53
    $region52: #{tpu_custom_call.1} parent=1 // pred_region
      %s1688 = ssub.s32 128, 128
      %1689 = vsyncadd [#allocation5], %s1688
      %s1691 = sshll.u32 [#allocation9], 4
      %s1692 = int_to_ptr.vmem [resolvable:$true] %s1691
      %1694 = dma.vmem_to_hbm [thread:$0]  %s1692, 128, %s9, [#allocation5]
    $region53: #{tpu_custom_call.1} parent=1 // pred_fallthru
      _
    // Predicated region
    $region54: #{tpu_custom_call.1} parent=1 // pred_check
      _
    $region55: #{tpu_custom_call.1} parent=1 // pred_check_branch
      %1696 = sbr.rel (0) target = $region57
    $region56: #{tpu_custom_call.1} parent=1 // pred_region
      %1697 = dma.done [#allocation5], 128
    $region57: #{tpu_custom_call.1} parent=1 // pred_fallthru
      _
    %1698 = vsyncpa [#allocation4], 1
    %1699 = vsyncpa [#allocation7], 1
    %1700 = vsyncpa [#allocation5], 1

</llo_original>
